<compile_context>
chip_gen: v7x
topology: tpu7x:2x2x1
jax: 0.10.0
libtpu: 0.0.40
codegen_flags: <defaults>
</compile_context>

<pallas_src>
import jax
import jax.numpy as jnp
from jax.experimental import pallas as pl
from jax.experimental.pallas import tpu as pltpu

# ---- small hyperparameters consistent with GAT.__init__ ----
INPUT_DIM = 8
HIDDEN_DIM = 32
LATENT_DIM = 16
N_LAYERS = 2
HEADS = 4
HEAD_DIM = HIDDEN_DIM // HEADS          # 8
N_NODES = 16
N_GRAPHS = 2
NEG_SLOPE = 0.2
BN_EPS = 1e-5
MASK_BIAS = -1e30


def _leaky(x):
    return jnp.where(x >= 0, x, NEG_SLOPE * x)


# ----------------------------------------------------------------------------
# In-kernel GATConv layer (all heads fused, concatenated [N, H*C] output).
# Pure function traced inside the single fused kernel body.
# ----------------------------------------------------------------------------
def _gat_layer(x, adj_bias, w_cat, asrc, adst, bias_cat):
    # x: [N, Fin], w_cat: [Fin, H*C], asrc/adst: [H, C], bias_cat: [1, H*C]
    h_all = jnp.dot(x, w_cat, preferred_element_type=jnp.float32)       # [N, H*C]
    head_outs = []
    for hd in range(HEADS):                                             # static unroll
        lo = hd * HEAD_DIM
        h_h = h_all[:, lo:lo + HEAD_DIM]                                # [N, C]
        # destination term: VPU multiply + lane reduce -> [N, 1]
        a_dst_col = jnp.sum(h_h * adst[hd:hd + 1, :], axis=-1, keepdims=True)
        # source term: tiny contraction producing the row layout directly -> [1, N]
        a_src_row = jax.lax.dot_general(
            asrc[hd:hd + 1, :], h_h, (((1,), (1,)), ((), ())),
            preferred_element_type=jnp.float32)
        e = _leaky(a_dst_col + a_src_row)                               # [N, N] logits
        e = e + adj_bias                                                # additive mask
        m = jnp.max(e, axis=-1, keepdims=True)
        p = jnp.exp(e - m)                                              # masked -> 0
        denom = jnp.maximum(jnp.sum(p, axis=-1, keepdims=True), 1e-30)
        alpha = p / denom                                               # [N, N]
        head_outs.append(jnp.dot(alpha, h_h,
                                 preferred_element_type=jnp.float32))   # [N, C]
    out = jnp.concatenate(head_outs, axis=-1) + bias_cat                # [N, H*C]
    # post-conv activation from GAT.forward; F.dropout is identity in eval mode
    return _leaky(out)


# ----------------------------------------------------------------------------
# Single fused kernel: GATConv x2 -> global_add_pool -> Linear -> BatchNorm1d
# ----------------------------------------------------------------------------
def _gat_fused_kernel(x_ref, adjb_ref,
                      w1_ref, as1_ref, ad1_ref, b1_ref,
                      w2_ref, as2_ref, ad2_ref, b2_ref,
                      pool_ref, wfc_ref, bfc_ref,
                      gamma_ref, beta_ref, mean_ref, var_ref,
                      o_ref):
    adj_bias = adjb_ref[...]                                            # [N, N]
    x = x_ref[...]                                                      # [N, Fin]
    x = _gat_layer(x, adj_bias, w1_ref[...], as1_ref[...], ad1_ref[...], b1_ref[...])
    x = _gat_layer(x, adj_bias, w2_ref[...], as2_ref[...], ad2_ref[...], b2_ref[...])

    pooled = jnp.dot(pool_ref[...], x, preferred_element_type=jnp.float32)   # [G, HIDDEN]
    out = jnp.dot(pooled, wfc_ref[...],
                  preferred_element_type=jnp.float32) + bfc_ref[...]         # [G, LATENT]
    inv = jax.lax.rsqrt(var_ref[...] + BN_EPS)
    o_ref[...] = (out - mean_ref[...]) * inv * gamma_ref[...] + beta_ref[...]


@jax.jit
def gat_forward(x, adj_bias, pool_mat, params):
    c1, c2 = params["convs"]
    return pl.pallas_call(
        _gat_fused_kernel,
        out_shape=jax.ShapeDtypeStruct((N_GRAPHS, LATENT_DIM), jnp.float32),
    )(x, adj_bias,
      c1["w"], c1["att_src"], c1["att_dst"], c1["bias"],
      c2["w"], c2["att_src"], c2["att_dst"], c2["bias"],
      pool_mat, params["fc_w"], params["fc_b"],
      params["bn_gamma"], params["bn_beta"], params["bn_mean"], params["bn_var"])


# ----------------------------------------------------------------------------
# Parameter / graph construction (deterministic, in-script)
# ----------------------------------------------------------------------------
def init_params(key):
    params = {"convs": []}
    in_dims = [INPUT_DIM] + [HIDDEN_DIM] * (N_LAYERS - 1)
    for fin in in_dims:
        key, k1, k2, k3, k4 = jax.random.split(key, 5)
        scale = (2.0 / (fin + HEAD_DIM)) ** 0.5
        params["convs"].append(dict(
            # per-head [Fin, C] weights stored concatenated along the output axis
            w=scale * jax.random.normal(k1, (fin, HEADS * HEAD_DIM), jnp.float32),
            att_src=0.1 * jax.random.normal(k2, (HEADS, HEAD_DIM), jnp.float32),
            att_dst=0.1 * jax.random.normal(k3, (HEADS, HEAD_DIM), jnp.float32),
            bias=0.1 * jax.random.normal(k4, (1, HEADS * HEAD_DIM), jnp.float32),
        ))
    key, k5, k6 = jax.random.split(key, 3)
    params["fc_w"] = ((2.0 / (HIDDEN_DIM + LATENT_DIM)) ** 0.5
                      * jax.random.normal(k5, (HIDDEN_DIM, LATENT_DIM), jnp.float32))
    params["fc_b"] = 0.1 * jax.random.normal(k6, (1, LATENT_DIM), jnp.float32)
    # BatchNorm1d defaults (eval mode): weight=1, bias=0, running_mean=0, running_var=1
    params["bn_gamma"] = jnp.ones((1, LATENT_DIM), jnp.float32)
    params["bn_beta"] = jnp.zeros((1, LATENT_DIM), jnp.float32)
    params["bn_mean"] = jnp.zeros((1, LATENT_DIM), jnp.float32)
    params["bn_var"] = jnp.ones((1, LATENT_DIM), jnp.float32)
    return params


def build_graph():
    # Two ring graphs of 8 nodes each. edge_index[0]=src, edge_index[1]=dst.
    src, dst = [], []
    n_per = N_NODES // N_GRAPHS
    for g in range(N_GRAPHS):
        base = g * n_per
        for i in range(n_per):
            src += [base + i, base + (i + 1) % n_per]
            dst += [base + (i + 1) % n_per, base + i]
    src = jnp.array(src)
    dst = jnp.array(dst)
    adj = jnp.zeros((N_NODES, N_NODES), jnp.float32).at[dst, src].set(1.0)
    adj = jnp.minimum(adj + jnp.eye(N_NODES, dtype=jnp.float32), 1.0)  # add_self_loops=True
    adj_bias = jnp.where(adj > 0, 0.0, MASK_BIAS).astype(jnp.float32)  # additive softmax mask
    batch = jnp.repeat(jnp.arange(N_GRAPHS), n_per)
    pool_mat = (batch[None, :] == jnp.arange(N_GRAPHS)[:, None]).astype(jnp.float32)  # [G, N]
    return adj, adj_bias, pool_mat


# ----------------------------------------------------------------------------
# Pure-JAX reference (per-head loops, -inf masking, jax.nn.softmax)
# ----------------------------------------------------------------------------
def gat_forward_ref(x, adj, pool_mat, params):
    mask = adj > 0
    for conv in params["convs"]:
        heads = []
        for h in range(HEADS):
            lo = h * HEAD_DIM
            w_h = conv["w"][:, lo:lo + HEAD_DIM]
            hh = x @ w_h
            a_src = (hh * conv["att_src"][h]).sum(-1)
            a_dst = (hh * conv["att_dst"][h]).sum(-1)
            e = a_dst[:, None] + a_src[None, :]
            e = jnp.where(e >= 0, e, NEG_SLOPE * e)
            e = jnp.where(mask, e, -jnp.inf)
            alpha = jax.nn.softmax(e, axis=-1)
            heads.append(alpha @ hh + conv["bias"][:, lo:lo + HEAD_DIM])
        x = jnp.concatenate(heads, axis=-1)
        x = jnp.where(x >= 0, x, NEG_SLOPE * x)
    out = pool_mat @ x
    out = out @ params["fc_w"] + params["fc_b"]
    return ((out - params["bn_mean"]) * jax.lax.rsqrt(params["bn_var"] + BN_EPS)
            * params["bn_gamma"] + params["bn_beta"])


if __name__ == "__main__":
    key = jax.random.PRNGKey(0)
    key, kx = jax.random.split(key)
    x = jax.random.normal(kx, (N_NODES, INPUT_DIM), jnp.float32)
    params = init_params(key)
    adj, adj_bias, pool_mat = build_graph()

    out = gat_forward(x, adj_bias, pool_mat, params)
    jax.block_until_ready(out)

    ref = gat_forward_ref(x, adj, pool_mat, params)
    assert out.shape == (N_GRAPHS, LATENT_DIM)
    assert jnp.allclose(out, ref, rtol=1e-3, atol=1e-3)
    print("KERNEL_OK")
</pallas_src>

<mosaic_0001>
module attributes {stable_mosaic.version = 11 : i64} {
  func.func @_gat_fused_kernel(%arg0: memref<16x8xf32, #tpu.memory_space<vmem>>, %arg1: memref<16x16xf32, #tpu.memory_space<vmem>>, %arg2: memref<8x32xf32, #tpu.memory_space<vmem>>, %arg3: memref<4x8xf32, #tpu.memory_space<vmem>>, %arg4: memref<4x8xf32, #tpu.memory_space<vmem>>, %arg5: memref<1x32xf32, #tpu.memory_space<vmem>>, %arg6: memref<32x32xf32, #tpu.memory_space<vmem>>, %arg7: memref<4x8xf32, #tpu.memory_space<vmem>>, %arg8: memref<4x8xf32, #tpu.memory_space<vmem>>, %arg9: memref<1x32xf32, #tpu.memory_space<vmem>>, %arg10: memref<2x16xf32, #tpu.memory_space<vmem>>, %arg11: memref<32x16xf32, #tpu.memory_space<vmem>>, %arg12: memref<1x16xf32, #tpu.memory_space<vmem>>, %arg13: memref<1x16xf32, #tpu.memory_space<vmem>>, %arg14: memref<1x16xf32, #tpu.memory_space<vmem>>, %arg15: memref<1x16xf32, #tpu.memory_space<vmem>>, %arg16: memref<1x16xf32, #tpu.memory_space<vmem>>, %arg17: memref<2x16xf32, #tpu.memory_space<vmem>>) attributes {dimension_semantics = [], scalar_prefetch = 0 : i64, scratch_operands = 0 : i64, tpu.core_type = #tpu.core_type<tc>} {
    %c0 = arith.constant 0 : index
    %c0_0 = arith.constant 0 : index
    %0 = vector.load %arg1[%c0, %c0_0] : memref<16x16xf32, #tpu.memory_space<vmem>>, vector<16x16xf32>
    %c0_1 = arith.constant 0 : index
    %c0_2 = arith.constant 0 : index
    %1 = vector.load %arg0[%c0_1, %c0_2] : memref<16x8xf32, #tpu.memory_space<vmem>>, vector<16x8xf32>
    %c0_3 = arith.constant 0 : index
    %c0_4 = arith.constant 0 : index
    %2 = vector.load %arg2[%c0_3, %c0_4] : memref<8x32xf32, #tpu.memory_space<vmem>>, vector<8x32xf32>
    %c0_5 = arith.constant 0 : index
    %c0_6 = arith.constant 0 : index
    %3 = vector.load %arg3[%c0_5, %c0_6] : memref<4x8xf32, #tpu.memory_space<vmem>>, vector<4x8xf32>
    %c0_7 = arith.constant 0 : index
    %c0_8 = arith.constant 0 : index
    %4 = vector.load %arg4[%c0_7, %c0_8] : memref<4x8xf32, #tpu.memory_space<vmem>>, vector<4x8xf32>
    %c0_9 = arith.constant 0 : index
    %c0_10 = arith.constant 0 : index
    %5 = vector.load %arg5[%c0_9, %c0_10] : memref<1x32xf32, #tpu.memory_space<vmem>>, vector<1x32xf32>
    %cst = arith.constant dense<0.000000e+00> : vector<16x32xf32>
    %6 = tpu.matmul %1, %2, %cst {dimension_numbers = #tpu.dot_dimension_numbers<[1], [0], [0], [1], [0, 0, 1, 1], [], []>} : vector<16x8xf32>, vector<8x32xf32>, vector<16x32xf32> -> vector<16x32xf32>
    %7 = vector.extract_strided_slice %6 {offsets = [0, 0], sizes = [16, 8], strides = [1, 1]} : vector<16x32xf32> to vector<16x8xf32>
    %8 = vector.extract_strided_slice %4 {offsets = [0, 0], sizes = [1, 8], strides = [1, 1]} : vector<4x8xf32> to vector<1x8xf32>
    %9 = vector.broadcast %8 : vector<1x8xf32> to vector<16x8xf32>
    %10 = arith.mulf %7, %9 : vector<16x8xf32>
    %cst_11 = arith.constant dense<0.000000e+00> : vector<16xf32>
    %11 = vector.multi_reduction <add>, %10, %cst_11 [1] : vector<16x8xf32> to vector<16xf32>
    %12 = vector.shape_cast %11 : vector<16xf32> to vector<16x1xf32>
    %13 = vector.extract_strided_slice %3 {offsets = [0, 0], sizes = [1, 8], strides = [1, 1]} : vector<4x8xf32> to vector<1x8xf32>
    %cst_12 = arith.constant dense<0.000000e+00> : vector<1x16xf32>
    %14 = tpu.matmul %13, %7, %cst_12 {dimension_numbers = #tpu.dot_dimension_numbers<[1], [1], [0], [0], [0, 0, 1, 0], [], []>} : vector<1x8xf32>, vector<16x8xf32>, vector<1x16xf32> -> vector<1x16xf32>
    %15 = vector.broadcast %12 : vector<16x1xf32> to vector<16x16xf32>
    %16 = vector.broadcast %14 : vector<1x16xf32> to vector<16x16xf32>
    %17 = arith.addf %15, %16 : vector<16x16xf32>
    %cst_13 = arith.constant 0.000000e+00 : f32
    %18 = vector.broadcast %cst_13 : f32 to vector<16x16xf32>
    %19 = arith.cmpf oge, %17, %18 : vector<16x16xf32>
    %cst_14 = arith.constant 2.000000e-01 : f32
    %20 = vector.broadcast %cst_14 : f32 to vector<16x16xf32>
    %21 = arith.mulf %20, %17 : vector<16x16xf32>
    %22 = arith.select %19, %17, %21 : vector<16x16xi1>, vector<16x16xf32>
    %23 = arith.addf %22, %0 : vector<16x16xf32>
    %cst_15 = arith.constant dense<0xFF800000> : vector<16xf32>
    %24 = vector.multi_reduction <maximumf>, %23, %cst_15 [1] : vector<16x16xf32> to vector<16xf32>
    %25 = vector.shape_cast %24 : vector<16xf32> to vector<16x1xf32>
    %26 = vector.broadcast %25 : vector<16x1xf32> to vector<16x16xf32>
    %27 = arith.subf %23, %26 : vector<16x16xf32>
    %28 = math.exp %27 : vector<16x16xf32>
    %cst_16 = arith.constant dense<0.000000e+00> : vector<16xf32>
    %29 = vector.multi_reduction <add>, %28, %cst_16 [1] : vector<16x16xf32> to vector<16xf32>
    %30 = vector.shape_cast %29 : vector<16xf32> to vector<16x1xf32>
    %cst_17 = arith.constant 1.000000e-30 : f32
    %31 = vector.broadcast %cst_17 : f32 to vector<16x1xf32>
    %32 = arith.maximumf %30, %31 : vector<16x1xf32>
    %33 = vector.broadcast %32 : vector<16x1xf32> to vector<16x16xf32>
    %34 = arith.divf %28, %33 : vector<16x16xf32>
    %cst_18 = arith.constant dense<0.000000e+00> : vector<16x8xf32>
    %35 = tpu.matmul %34, %7, %cst_18 {dimension_numbers = #tpu.dot_dimension_numbers<[1], [0], [0], [1], [0, 0, 1, 1], [], []>} : vector<16x16xf32>, vector<16x8xf32>, vector<16x8xf32> -> vector<16x8xf32>
    %36 = vector.extract_strided_slice %6 {offsets = [0, 8], sizes = [16, 8], strides = [1, 1]} : vector<16x32xf32> to vector<16x8xf32>
    %37 = vector.extract_strided_slice %4 {offsets = [1, 0], sizes = [1, 8], strides = [1, 1]} : vector<4x8xf32> to vector<1x8xf32>
    %38 = vector.broadcast %37 : vector<1x8xf32> to vector<16x8xf32>
    %39 = arith.mulf %36, %38 : vector<16x8xf32>
    %cst_19 = arith.constant dense<0.000000e+00> : vector<16xf32>
    %40 = vector.multi_reduction <add>, %39, %cst_19 [1] : vector<16x8xf32> to vector<16xf32>
    %41 = vector.shape_cast %40 : vector<16xf32> to vector<16x1xf32>
    %42 = vector.extract_strided_slice %3 {offsets = [1, 0], sizes = [1, 8], strides = [1, 1]} : vector<4x8xf32> to vector<1x8xf32>
    %cst_20 = arith.constant dense<0.000000e+00> : vector<1x16xf32>
    %43 = tpu.matmul %42, %36, %cst_20 {dimension_numbers = #tpu.dot_dimension_numbers<[1], [1], [0], [0], [0, 0, 1, 0], [], []>} : vector<1x8xf32>, vector<16x8xf32>, vector<1x16xf32> -> vector<1x16xf32>
    %44 = vector.broadcast %41 : vector<16x1xf32> to vector<16x16xf32>
    %45 = vector.broadcast %43 : vector<1x16xf32> to vector<16x16xf32>
    %46 = arith.addf %44, %45 : vector<16x16xf32>
    %cst_21 = arith.constant 0.000000e+00 : f32
    %47 = vector.broadcast %cst_21 : f32 to vector<16x16xf32>
    %48 = arith.cmpf oge, %46, %47 : vector<16x16xf32>
    %cst_22 = arith.constant 2.000000e-01 : f32
    %49 = vector.broadcast %cst_22 : f32 to vector<16x16xf32>
    %50 = arith.mulf %49, %46 : vector<16x16xf32>
    %51 = arith.select %48, %46, %50 : vector<16x16xi1>, vector<16x16xf32>
    %52 = arith.addf %51, %0 : vector<16x16xf32>
    %cst_23 = arith.constant dense<0xFF800000> : vector<16xf32>
    %53 = vector.multi_reduction <maximumf>, %52, %cst_23 [1] : vector<16x16xf32> to vector<16xf32>
    %54 = vector.shape_cast %53 : vector<16xf32> to vector<16x1xf32>
    %55 = vector.broadcast %54 : vector<16x1xf32> to vector<16x16xf32>
    %56 = arith.subf %52, %55 : vector<16x16xf32>
    %57 = math.exp %56 : vector<16x16xf32>
    %cst_24 = arith.constant dense<0.000000e+00> : vector<16xf32>
    %58 = vector.multi_reduction <add>, %57, %cst_24 [1] : vector<16x16xf32> to vector<16xf32>
    %59 = vector.shape_cast %58 : vector<16xf32> to vector<16x1xf32>
    %cst_25 = arith.constant 1.000000e-30 : f32
    %60 = vector.broadcast %cst_25 : f32 to vector<16x1xf32>
    %61 = arith.maximumf %59, %60 : vector<16x1xf32>
    %62 = vector.broadcast %61 : vector<16x1xf32> to vector<16x16xf32>
    %63 = arith.divf %57, %62 : vector<16x16xf32>
    %cst_26 = arith.constant dense<0.000000e+00> : vector<16x8xf32>
    %64 = tpu.matmul %63, %36, %cst_26 {dimension_numbers = #tpu.dot_dimension_numbers<[1], [0], [0], [1], [0, 0, 1, 1], [], []>} : vector<16x16xf32>, vector<16x8xf32>, vector<16x8xf32> -> vector<16x8xf32>
    %65 = vector.extract_strided_slice %6 {offsets = [0, 16], sizes = [16, 8], strides = [1, 1]} : vector<16x32xf32> to vector<16x8xf32>
    %66 = vector.extract_strided_slice %4 {offsets = [2, 0], sizes = [1, 8], strides = [1, 1]} : vector<4x8xf32> to vector<1x8xf32>
    %67 = vector.broadcast %66 : vector<1x8xf32> to vector<16x8xf32>
    %68 = arith.mulf %65, %67 : vector<16x8xf32>
    %cst_27 = arith.constant dense<0.000000e+00> : vector<16xf32>
    %69 = vector.multi_reduction <add>, %68, %cst_27 [1] : vector<16x8xf32> to vector<16xf32>
    %70 = vector.shape_cast %69 : vector<16xf32> to vector<16x1xf32>
    %71 = vector.extract_strided_slice %3 {offsets = [2, 0], sizes = [1, 8], strides = [1, 1]} : vector<4x8xf32> to vector<1x8xf32>
    %cst_28 = arith.constant dense<0.000000e+00> : vector<1x16xf32>
    %72 = tpu.matmul %71, %65, %cst_28 {dimension_numbers = #tpu.dot_dimension_numbers<[1], [1], [0], [0], [0, 0, 1, 0], [], []>} : vector<1x8xf32>, vector<16x8xf32>, vector<1x16xf32> -> vector<1x16xf32>
    %73 = vector.broadcast %70 : vector<16x1xf32> to vector<16x16xf32>
    %74 = vector.broadcast %72 : vector<1x16xf32> to vector<16x16xf32>
    %75 = arith.addf %73, %74 : vector<16x16xf32>
    %cst_29 = arith.constant 0.000000e+00 : f32
    %76 = vector.broadcast %cst_29 : f32 to vector<16x16xf32>
    %77 = arith.cmpf oge, %75, %76 : vector<16x16xf32>
    %cst_30 = arith.constant 2.000000e-01 : f32
    %78 = vector.broadcast %cst_30 : f32 to vector<16x16xf32>
    %79 = arith.mulf %78, %75 : vector<16x16xf32>
    %80 = arith.select %77, %75, %79 : vector<16x16xi1>, vector<16x16xf32>
    %81 = arith.addf %80, %0 : vector<16x16xf32>
    %cst_31 = arith.constant dense<0xFF800000> : vector<16xf32>
    %82 = vector.multi_reduction <maximumf>, %81, %cst_31 [1] : vector<16x16xf32> to vector<16xf32>
    %83 = vector.shape_cast %82 : vector<16xf32> to vector<16x1xf32>
    %84 = vector.broadcast %83 : vector<16x1xf32> to vector<16x16xf32>
    %85 = arith.subf %81, %84 : vector<16x16xf32>
    %86 = math.exp %85 : vector<16x16xf32>
    %cst_32 = arith.constant dense<0.000000e+00> : vector<16xf32>
    %87 = vector.multi_reduction <add>, %86, %cst_32 [1] : vector<16x16xf32> to vector<16xf32>
    %88 = vector.shape_cast %87 : vector<16xf32> to vector<16x1xf32>
    %cst_33 = arith.constant 1.000000e-30 : f32
    %89 = vector.broadcast %cst_33 : f32 to vector<16x1xf32>
    %90 = arith.maximumf %88, %89 : vector<16x1xf32>
    %91 = vector.broadcast %90 : vector<16x1xf32> to vector<16x16xf32>
    %92 = arith.divf %86, %91 : vector<16x16xf32>
    %cst_34 = arith.constant dense<0.000000e+00> : vector<16x8xf32>
    %93 = tpu.matmul %92, %65, %cst_34 {dimension_numbers = #tpu.dot_dimension_numbers<[1], [0], [0], [1], [0, 0, 1, 1], [], []>} : vector<16x16xf32>, vector<16x8xf32>, vector<16x8xf32> -> vector<16x8xf32>
    %94 = vector.extract_strided_slice %6 {offsets = [0, 24], sizes = [16, 8], strides = [1, 1]} : vector<16x32xf32> to vector<16x8xf32>
    %95 = vector.extract_strided_slice %4 {offsets = [3, 0], sizes = [1, 8], strides = [1, 1]} : vector<4x8xf32> to vector<1x8xf32>
    %96 = vector.broadcast %95 : vector<1x8xf32> to vector<16x8xf32>
    %97 = arith.mulf %94, %96 : vector<16x8xf32>
    %cst_35 = arith.constant dense<0.000000e+00> : vector<16xf32>
    %98 = vector.multi_reduction <add>, %97, %cst_35 [1] : vector<16x8xf32> to vector<16xf32>
    %99 = vector.shape_cast %98 : vector<16xf32> to vector<16x1xf32>
    %100 = vector.extract_strided_slice %3 {offsets = [3, 0], sizes = [1, 8], strides = [1, 1]} : vector<4x8xf32> to vector<1x8xf32>
    %cst_36 = arith.constant dense<0.000000e+00> : vector<1x16xf32>
    %101 = tpu.matmul %100, %94, %cst_36 {dimension_numbers = #tpu.dot_dimension_numbers<[1], [1], [0], [0], [0, 0, 1, 0], [], []>} : vector<1x8xf32>, vector<16x8xf32>, vector<1x16xf32> -> vector<1x16xf32>
    %102 = vector.broadcast %99 : vector<16x1xf32> to vector<16x16xf32>
    %103 = vector.broadcast %101 : vector<1x16xf32> to vector<16x16xf32>
    %104 = arith.addf %102, %103 : vector<16x16xf32>
    %cst_37 = arith.constant 0.000000e+00 : f32
    %105 = vector.broadcast %cst_37 : f32 to vector<16x16xf32>
    %106 = arith.cmpf oge, %104, %105 : vector<16x16xf32>
    %cst_38 = arith.constant 2.000000e-01 : f32
    %107 = vector.broadcast %cst_38 : f32 to vector<16x16xf32>
    %108 = arith.mulf %107, %104 : vector<16x16xf32>
    %109 = arith.select %106, %104, %108 : vector<16x16xi1>, vector<16x16xf32>
    %110 = arith.addf %109, %0 : vector<16x16xf32>
    %cst_39 = arith.constant dense<0xFF800000> : vector<16xf32>
    %111 = vector.multi_reduction <maximumf>, %110, %cst_39 [1] : vector<16x16xf32> to vector<16xf32>
    %112 = vector.shape_cast %111 : vector<16xf32> to vector<16x1xf32>
    %113 = vector.broadcast %112 : vector<16x1xf32> to vector<16x16xf32>
    %114 = arith.subf %110, %113 : vector<16x16xf32>
    %115 = math.exp %114 : vector<16x16xf32>
    %cst_40 = arith.constant dense<0.000000e+00> : vector<16xf32>
    %116 = vector.multi_reduction <add>, %115, %cst_40 [1] : vector<16x16xf32> to vector<16xf32>
    %117 = vector.shape_cast %116 : vector<16xf32> to vector<16x1xf32>
    %cst_41 = arith.constant 1.000000e-30 : f32
    %118 = vector.broadcast %cst_41 : f32 to vector<16x1xf32>
    %119 = arith.maximumf %117, %118 : vector<16x1xf32>
    %120 = vector.broadcast %119 : vector<16x1xf32> to vector<16x16xf32>
    %121 = arith.divf %115, %120 : vector<16x16xf32>
    %cst_42 = arith.constant dense<0.000000e+00> : vector<16x8xf32>
    %122 = tpu.matmul %121, %94, %cst_42 {dimension_numbers = #tpu.dot_dimension_numbers<[1], [0], [0], [1], [0, 0, 1, 1], [], []>} : vector<16x16xf32>, vector<16x8xf32>, vector<16x8xf32> -> vector<16x8xf32>
    %123 = tpu.concatenate %35, %64, %93, %122 in 1 : vector<16x8xf32>, vector<16x8xf32>, vector<16x8xf32>, vector<16x8xf32> -> vector<16x32xf32>
    %124 = vector.broadcast %5 : vector<1x32xf32> to vector<16x32xf32>
    %125 = arith.addf %123, %124 : vector<16x32xf32>
    %cst_43 = arith.constant 0.000000e+00 : f32
    %126 = vector.broadcast %cst_43 : f32 to vector<16x32xf32>
    %127 = arith.cmpf oge, %125, %126 : vector<16x32xf32>
    %cst_44 = arith.constant 2.000000e-01 : f32
    %128 = vector.broadcast %cst_44 : f32 to vector<16x32xf32>
    %129 = arith.mulf %128, %125 : vector<16x32xf32>
    %130 = arith.select %127, %125, %129 : vector<16x32xi1>, vector<16x32xf32>
    %c0_45 = arith.constant 0 : index
    %c0_46 = arith.constant 0 : index
    %131 = vector.load %arg6[%c0_45, %c0_46] : memref<32x32xf32, #tpu.memory_space<vmem>>, vector<32x32xf32>
    %c0_47 = arith.constant 0 : index
    %c0_48 = arith.constant 0 : index
    %132 = vector.load %arg7[%c0_47, %c0_48] : memref<4x8xf32, #tpu.memory_space<vmem>>, vector<4x8xf32>
    %c0_49 = arith.constant 0 : index
    %c0_50 = arith.constant 0 : index
    %133 = vector.load %arg8[%c0_49, %c0_50] : memref<4x8xf32, #tpu.memory_space<vmem>>, vector<4x8xf32>
    %c0_51 = arith.constant 0 : index
    %c0_52 = arith.constant 0 : index
    %134 = vector.load %arg9[%c0_51, %c0_52] : memref<1x32xf32, #tpu.memory_space<vmem>>, vector<1x32xf32>
    %cst_53 = arith.constant dense<0.000000e+00> : vector<16x32xf32>
    %135 = tpu.matmul %130, %131, %cst_53 {dimension_numbers = #tpu.dot_dimension_numbers<[1], [0], [0], [1], [0, 0, 1, 1], [], []>} : vector<16x32xf32>, vector<32x32xf32>, vector<16x32xf32> -> vector<16x32xf32>
    %136 = vector.extract_strided_slice %135 {offsets = [0, 0], sizes = [16, 8], strides = [1, 1]} : vector<16x32xf32> to vector<16x8xf32>
    %137 = vector.extract_strided_slice %133 {offsets = [0, 0], sizes = [1, 8], strides = [1, 1]} : vector<4x8xf32> to vector<1x8xf32>
    %138 = vector.broadcast %137 : vector<1x8xf32> to vector<16x8xf32>
    %139 = arith.mulf %136, %138 : vector<16x8xf32>
    %cst_54 = arith.constant dense<0.000000e+00> : vector<16xf32>
    %140 = vector.multi_reduction <add>, %139, %cst_54 [1] : vector<16x8xf32> to vector<16xf32>
    %141 = vector.shape_cast %140 : vector<16xf32> to vector<16x1xf32>
    %142 = vector.extract_strided_slice %132 {offsets = [0, 0], sizes = [1, 8], strides = [1, 1]} : vector<4x8xf32> to vector<1x8xf32>
    %cst_55 = arith.constant dense<0.000000e+00> : vector<1x16xf32>
    %143 = tpu.matmul %142, %136, %cst_55 {dimension_numbers = #tpu.dot_dimension_numbers<[1], [1], [0], [0], [0, 0, 1, 0], [], []>} : vector<1x8xf32>, vector<16x8xf32>, vector<1x16xf32> -> vector<1x16xf32>
    %144 = vector.broadcast %141 : vector<16x1xf32> to vector<16x16xf32>
    %145 = vector.broadcast %143 : vector<1x16xf32> to vector<16x16xf32>
    %146 = arith.addf %144, %145 : vector<16x16xf32>
    %cst_56 = arith.constant 0.000000e+00 : f32
    %147 = vector.broadcast %cst_56 : f32 to vector<16x16xf32>
    %148 = arith.cmpf oge, %146, %147 : vector<16x16xf32>
    %cst_57 = arith.constant 2.000000e-01 : f32
    %149 = vector.broadcast %cst_57 : f32 to vector<16x16xf32>
    %150 = arith.mulf %149, %146 : vector<16x16xf32>
    %151 = arith.select %148, %146, %150 : vector<16x16xi1>, vector<16x16xf32>
    %152 = arith.addf %151, %0 : vector<16x16xf32>
    %cst_58 = arith.constant dense<0xFF800000> : vector<16xf32>
    %153 = vector.multi_reduction <maximumf>, %152, %cst_58 [1] : vector<16x16xf32> to vector<16xf32>
    %154 = vector.shape_cast %153 : vector<16xf32> to vector<16x1xf32>
    %155 = vector.broadcast %154 : vector<16x1xf32> to vector<16x16xf32>
    %156 = arith.subf %152, %155 : vector<16x16xf32>
    %157 = math.exp %156 : vector<16x16xf32>
    %cst_59 = arith.constant dense<0.000000e+00> : vector<16xf32>
    %158 = vector.multi_reduction <add>, %157, %cst_59 [1] : vector<16x16xf32> to vector<16xf32>
    %159 = vector.shape_cast %158 : vector<16xf32> to vector<16x1xf32>
    %cst_60 = arith.constant 1.000000e-30 : f32
    %160 = vector.broadcast %cst_60 : f32 to vector<16x1xf32>
    %161 = arith.maximumf %159, %160 : vector<16x1xf32>
    %162 = vector.broadcast %161 : vector<16x1xf32> to vector<16x16xf32>
    %163 = arith.divf %157, %162 : vector<16x16xf32>
    %cst_61 = arith.constant dense<0.000000e+00> : vector<16x8xf32>
    %164 = tpu.matmul %163, %136, %cst_61 {dimension_numbers = #tpu.dot_dimension_numbers<[1], [0], [0], [1], [0, 0, 1, 1], [], []>} : vector<16x16xf32>, vector<16x8xf32>, vector<16x8xf32> -> vector<16x8xf32>
    %165 = vector.extract_strided_slice %135 {offsets = [0, 8], sizes = [16, 8], strides = [1, 1]} : vector<16x32xf32> to vector<16x8xf32>
    %166 = vector.extract_strided_slice %133 {offsets = [1, 0], sizes = [1, 8], strides = [1, 1]} : vector<4x8xf32> to vector<1x8xf32>
    %167 = vector.broadcast %166 : vector<1x8xf32> to vector<16x8xf32>
    %168 = arith.mulf %165, %167 : vector<16x8xf32>
    %cst_62 = arith.constant dense<0.000000e+00> : vector<16xf32>
    %169 = vector.multi_reduction <add>, %168, %cst_62 [1] : vector<16x8xf32> to vector<16xf32>
    %170 = vector.shape_cast %169 : vector<16xf32> to vector<16x1xf32>
    %171 = vector.extract_strided_slice %132 {offsets = [1, 0], sizes = [1, 8], strides = [1, 1]} : vector<4x8xf32> to vector<1x8xf32>
    %cst_63 = arith.constant dense<0.000000e+00> : vector<1x16xf32>
    %172 = tpu.matmul %171, %165, %cst_63 {dimension_numbers = #tpu.dot_dimension_numbers<[1], [1], [0], [0], [0, 0, 1, 0], [], []>} : vector<1x8xf32>, vector<16x8xf32>, vector<1x16xf32> -> vector<1x16xf32>
    %173 = vector.broadcast %170 : vector<16x1xf32> to vector<16x16xf32>
    %174 = vector.broadcast %172 : vector<1x16xf32> to vector<16x16xf32>
    %175 = arith.addf %173, %174 : vector<16x16xf32>
    %cst_64 = arith.constant 0.000000e+00 : f32
    %176 = vector.broadcast %cst_64 : f32 to vector<16x16xf32>
    %177 = arith.cmpf oge, %175, %176 : vector<16x16xf32>
    %cst_65 = arith.constant 2.000000e-01 : f32
    %178 = vector.broadcast %cst_65 : f32 to vector<16x16xf32>
    %179 = arith.mulf %178, %175 : vector<16x16xf32>
    %180 = arith.select %177, %175, %179 : vector<16x16xi1>, vector<16x16xf32>
    %181 = arith.addf %180, %0 : vector<16x16xf32>
    %cst_66 = arith.constant dense<0xFF800000> : vector<16xf32>
    %182 = vector.multi_reduction <maximumf>, %181, %cst_66 [1] : vector<16x16xf32> to vector<16xf32>
    %183 = vector.shape_cast %182 : vector<16xf32> to vector<16x1xf32>
    %184 = vector.broadcast %183 : vector<16x1xf32> to vector<16x16xf32>
    %185 = arith.subf %181, %184 : vector<16x16xf32>
    %186 = math.exp %185 : vector<16x16xf32>
    %cst_67 = arith.constant dense<0.000000e+00> : vector<16xf32>
    %187 = vector.multi_reduction <add>, %186, %cst_67 [1] : vector<16x16xf32> to vector<16xf32>
    %188 = vector.shape_cast %187 : vector<16xf32> to vector<16x1xf32>
    %cst_68 = arith.constant 1.000000e-30 : f32
    %189 = vector.broadcast %cst_68 : f32 to vector<16x1xf32>
    %190 = arith.maximumf %188, %189 : vector<16x1xf32>
    %191 = vector.broadcast %190 : vector<16x1xf32> to vector<16x16xf32>
    %192 = arith.divf %186, %191 : vector<16x16xf32>
    %cst_69 = arith.constant dense<0.000000e+00> : vector<16x8xf32>
    %193 = tpu.matmul %192, %165, %cst_69 {dimension_numbers = #tpu.dot_dimension_numbers<[1], [0], [0], [1], [0, 0, 1, 1], [], []>} : vector<16x16xf32>, vector<16x8xf32>, vector<16x8xf32> -> vector<16x8xf32>
    %194 = vector.extract_strided_slice %135 {offsets = [0, 16], sizes = [16, 8], strides = [1, 1]} : vector<16x32xf32> to vector<16x8xf32>
    %195 = vector.extract_strided_slice %133 {offsets = [2, 0], sizes = [1, 8], strides = [1, 1]} : vector<4x8xf32> to vector<1x8xf32>
    %196 = vector.broadcast %195 : vector<1x8xf32> to vector<16x8xf32>
    %197 = arith.mulf %194, %196 : vector<16x8xf32>
    %cst_70 = arith.constant dense<0.000000e+00> : vector<16xf32>
    %198 = vector.multi_reduction <add>, %197, %cst_70 [1] : vector<16x8xf32> to vector<16xf32>
    %199 = vector.shape_cast %198 : vector<16xf32> to vector<16x1xf32>
    %200 = vector.extract_strided_slice %132 {offsets = [2, 0], sizes = [1, 8], strides = [1, 1]} : vector<4x8xf32> to vector<1x8xf32>
    %cst_71 = arith.constant dense<0.000000e+00> : vector<1x16xf32>
    %201 = tpu.matmul %200, %194, %cst_71 {dimension_numbers = #tpu.dot_dimension_numbers<[1], [1], [0], [0], [0, 0, 1, 0], [], []>} : vector<1x8xf32>, vector<16x8xf32>, vector<1x16xf32> -> vector<1x16xf32>
    %202 = vector.broadcast %199 : vector<16x1xf32> to vector<16x16xf32>
    %203 = vector.broadcast %201 : vector<1x16xf32> to vector<16x16xf32>
    %204 = arith.addf %202, %203 : vector<16x16xf32>
    %cst_72 = arith.constant 0.000000e+00 : f32
    %205 = vector.broadcast %cst_72 : f32 to vector<16x16xf32>
    %206 = arith.cmpf oge, %204, %205 : vector<16x16xf32>
    %cst_73 = arith.constant 2.000000e-01 : f32
    %207 = vector.broadcast %cst_73 : f32 to vector<16x16xf32>
    %208 = arith.mulf %207, %204 : vector<16x16xf32>
    %209 = arith.select %206, %204, %208 : vector<16x16xi1>, vector<16x16xf32>
    %210 = arith.addf %209, %0 : vector<16x16xf32>
    %cst_74 = arith.constant dense<0xFF800000> : vector<16xf32>
    %211 = vector.multi_reduction <maximumf>, %210, %cst_74 [1] : vector<16x16xf32> to vector<16xf32>
    %212 = vector.shape_cast %211 : vector<16xf32> to vector<16x1xf32>
    %213 = vector.broadcast %212 : vector<16x1xf32> to vector<16x16xf32>
    %214 = arith.subf %210, %213 : vector<16x16xf32>
    %215 = math.exp %214 : vector<16x16xf32>
    %cst_75 = arith.constant dense<0.000000e+00> : vector<16xf32>
    %216 = vector.multi_reduction <add>, %215, %cst_75 [1] : vector<16x16xf32> to vector<16xf32>
    %217 = vector.shape_cast %216 : vector<16xf32> to vector<16x1xf32>
    %cst_76 = arith.constant 1.000000e-30 : f32
    %218 = vector.broadcast %cst_76 : f32 to vector<16x1xf32>
    %219 = arith.maximumf %217, %218 : vector<16x1xf32>
    %220 = vector.broadcast %219 : vector<16x1xf32> to vector<16x16xf32>
    %221 = arith.divf %215, %220 : vector<16x16xf32>
    %cst_77 = arith.constant dense<0.000000e+00> : vector<16x8xf32>
    %222 = tpu.matmul %221, %194, %cst_77 {dimension_numbers = #tpu.dot_dimension_numbers<[1], [0], [0], [1], [0, 0, 1, 1], [], []>} : vector<16x16xf32>, vector<16x8xf32>, vector<16x8xf32> -> vector<16x8xf32>
    %223 = vector.extract_strided_slice %135 {offsets = [0, 24], sizes = [16, 8], strides = [1, 1]} : vector<16x32xf32> to vector<16x8xf32>
    %224 = vector.extract_strided_slice %133 {offsets = [3, 0], sizes = [1, 8], strides = [1, 1]} : vector<4x8xf32> to vector<1x8xf32>
    %225 = vector.broadcast %224 : vector<1x8xf32> to vector<16x8xf32>
    %226 = arith.mulf %223, %225 : vector<16x8xf32>
    %cst_78 = arith.constant dense<0.000000e+00> : vector<16xf32>
    %227 = vector.multi_reduction <add>, %226, %cst_78 [1] : vector<16x8xf32> to vector<16xf32>
    %228 = vector.shape_cast %227 : vector<16xf32> to vector<16x1xf32>
    %229 = vector.extract_strided_slice %132 {offsets = [3, 0], sizes = [1, 8], strides = [1, 1]} : vector<4x8xf32> to vector<1x8xf32>
    %cst_79 = arith.constant dense<0.000000e+00> : vector<1x16xf32>
    %230 = tpu.matmul %229, %223, %cst_79 {dimension_numbers = #tpu.dot_dimension_numbers<[1], [1], [0], [0], [0, 0, 1, 0], [], []>} : vector<1x8xf32>, vector<16x8xf32>, vector<1x16xf32> -> vector<1x16xf32>
    %231 = vector.broadcast %228 : vector<16x1xf32> to vector<16x16xf32>
    %232 = vector.broadcast %230 : vector<1x16xf32> to vector<16x16xf32>
    %233 = arith.addf %231, %232 : vector<16x16xf32>
    %cst_80 = arith.constant 0.000000e+00 : f32
    %234 = vector.broadcast %cst_80 : f32 to vector<16x16xf32>
    %235 = arith.cmpf oge, %233, %234 : vector<16x16xf32>
    %cst_81 = arith.constant 2.000000e-01 : f32
    %236 = vector.broadcast %cst_81 : f32 to vector<16x16xf32>
    %237 = arith.mulf %236, %233 : vector<16x16xf32>
    %238 = arith.select %235, %233, %237 : vector<16x16xi1>, vector<16x16xf32>
    %239 = arith.addf %238, %0 : vector<16x16xf32>
    %cst_82 = arith.constant dense<0xFF800000> : vector<16xf32>
    %240 = vector.multi_reduction <maximumf>, %239, %cst_82 [1] : vector<16x16xf32> to vector<16xf32>
    %241 = vector.shape_cast %240 : vector<16xf32> to vector<16x1xf32>
    %242 = vector.broadcast %241 : vector<16x1xf32> to vector<16x16xf32>
    %243 = arith.subf %239, %242 : vector<16x16xf32>
    %244 = math.exp %243 : vector<16x16xf32>
    %cst_83 = arith.constant dense<0.000000e+00> : vector<16xf32>
    %245 = vector.multi_reduction <add>, %244, %cst_83 [1] : vector<16x16xf32> to vector<16xf32>
    %246 = vector.shape_cast %245 : vector<16xf32> to vector<16x1xf32>
    %cst_84 = arith.constant 1.000000e-30 : f32
    %247 = vector.broadcast %cst_84 : f32 to vector<16x1xf32>
    %248 = arith.maximumf %246, %247 : vector<16x1xf32>
    %249 = vector.broadcast %248 : vector<16x1xf32> to vector<16x16xf32>
    %250 = arith.divf %244, %249 : vector<16x16xf32>
    %cst_85 = arith.constant dense<0.000000e+00> : vector<16x8xf32>
    %251 = tpu.matmul %250, %223, %cst_85 {dimension_numbers = #tpu.dot_dimension_numbers<[1], [0], [0], [1], [0, 0, 1, 1], [], []>} : vector<16x16xf32>, vector<16x8xf32>, vector<16x8xf32> -> vector<16x8xf32>
    %252 = tpu.concatenate %164, %193, %222, %251 in 1 : vector<16x8xf32>, vector<16x8xf32>, vector<16x8xf32>, vector<16x8xf32> -> vector<16x32xf32>
    %253 = vector.broadcast %134 : vector<1x32xf32> to vector<16x32xf32>
    %254 = arith.addf %252, %253 : vector<16x32xf32>
    %cst_86 = arith.constant 0.000000e+00 : f32
    %255 = vector.broadcast %cst_86 : f32 to vector<16x32xf32>
    %256 = arith.cmpf oge, %254, %255 : vector<16x32xf32>
    %cst_87 = arith.constant 2.000000e-01 : f32
    %257 = vector.broadcast %cst_87 : f32 to vector<16x32xf32>
    %258 = arith.mulf %257, %254 : vector<16x32xf32>
    %259 = arith.select %256, %254, %258 : vector<16x32xi1>, vector<16x32xf32>
    %c0_88 = arith.constant 0 : index
    %c0_89 = arith.constant 0 : index
    %260 = vector.load %arg10[%c0_88, %c0_89] : memref<2x16xf32, #tpu.memory_space<vmem>>, vector<2x16xf32>
    %cst_90 = arith.constant dense<0.000000e+00> : vector<2x32xf32>
    %261 = tpu.matmul %260, %259, %cst_90 {dimension_numbers = #tpu.dot_dimension_numbers<[1], [0], [0], [1], [0, 0, 1, 1], [], []>} : vector<2x16xf32>, vector<16x32xf32>, vector<2x32xf32> -> vector<2x32xf32>
    %c0_91 = arith.constant 0 : index
    %c0_92 = arith.constant 0 : index
    %262 = vector.load %arg11[%c0_91, %c0_92] : memref<32x16xf32, #tpu.memory_space<vmem>>, vector<32x16xf32>
    %cst_93 = arith.constant dense<0.000000e+00> : vector<2x16xf32>
    %263 = tpu.matmul %261, %262, %cst_93 {dimension_numbers = #tpu.dot_dimension_numbers<[1], [0], [0], [1], [0, 0, 1, 1], [], []>} : vector<2x32xf32>, vector<32x16xf32>, vector<2x16xf32> -> vector<2x16xf32>
    %c0_94 = arith.constant 0 : index
    %c0_95 = arith.constant 0 : index
    %264 = vector.load %arg12[%c0_94, %c0_95] : memref<1x16xf32, #tpu.memory_space<vmem>>, vector<1x16xf32>
    %265 = vector.broadcast %264 : vector<1x16xf32> to vector<2x16xf32>
    %266 = arith.addf %263, %265 : vector<2x16xf32>
    %c0_96 = arith.constant 0 : index
    %c0_97 = arith.constant 0 : index
    %267 = vector.load %arg16[%c0_96, %c0_97] : memref<1x16xf32, #tpu.memory_space<vmem>>, vector<1x16xf32>
    %cst_98 = arith.constant 9.99999974E-6 : f32
    %268 = vector.broadcast %cst_98 : f32 to vector<1x16xf32>
    %269 = arith.addf %267, %268 : vector<1x16xf32>
    %270 = math.rsqrt %269 : vector<1x16xf32>
    %c0_99 = arith.constant 0 : index
    %c0_100 = arith.constant 0 : index
    %271 = vector.load %arg15[%c0_99, %c0_100] : memref<1x16xf32, #tpu.memory_space<vmem>>, vector<1x16xf32>
    %272 = vector.broadcast %271 : vector<1x16xf32> to vector<2x16xf32>
    %273 = arith.subf %266, %272 : vector<2x16xf32>
    %274 = vector.broadcast %270 : vector<1x16xf32> to vector<2x16xf32>
    %275 = arith.mulf %273, %274 : vector<2x16xf32>
    %c0_101 = arith.constant 0 : index
    %c0_102 = arith.constant 0 : index
    %276 = vector.load %arg13[%c0_101, %c0_102] : memref<1x16xf32, #tpu.memory_space<vmem>>, vector<1x16xf32>
    %277 = vector.broadcast %276 : vector<1x16xf32> to vector<2x16xf32>
    %278 = arith.mulf %275, %277 : vector<2x16xf32>
    %c0_103 = arith.constant 0 : index
    %c0_104 = arith.constant 0 : index
    %279 = vector.load %arg14[%c0_103, %c0_104] : memref<1x16xf32, #tpu.memory_space<vmem>>, vector<1x16xf32>
    %280 = vector.broadcast %279 : vector<1x16xf32> to vector<2x16xf32>
    %281 = arith.addf %278, %280 : vector<2x16xf32>
    %c0_105 = arith.constant 0 : index
    %c0_106 = arith.constant 0 : index
    %282 = vector.load %arg17[%c0_105, %c0_106] : memref<2x16xf32, #tpu.memory_space<vmem>>, vector<2x16xf32>
    tpu.vector_store %arg17[%c0_105, %c0_106], %281 {strides = array<i32>} : memref<2x16xf32, #tpu.memory_space<vmem>>, vector<2x16xf32>,
    return
  }
}

</mosaic_0001>

<llo_original>
// kernel: gat_forward.1
$region0: #{gat_forward.1}
  #allocation0 [shape = 'u32[]', space=smem, size = 0x4, offset = 0x4, fixed_abs, tag = 'smem constant byte address 0x4 - core index']
  #allocation1 [shape = 'u32[144,128]{1,0:T(1,128)}', space=vmem, size = 0x12000, scoped, tag = 'internal scratch']
  %s0 = inlined_call_operand.vmem [shape: f32[16,8], index: 0, kind: input, shape index: {}]
  %s1 = inlined_call_operand.vmem [shape: f32[16,16], index: 1, kind: input, shape index: {}]
  %s2 = inlined_call_operand.vmem [shape: f32[8,32], index: 2, kind: input, shape index: {}]
  %s3 = inlined_call_operand.vmem [shape: f32[4,8], index: 3, kind: input, shape index: {}]
  %s4 = inlined_call_operand.vmem [shape: f32[4,8], index: 4, kind: input, shape index: {}]
  %s5 = inlined_call_operand.vmem [shape: f32[1,32], index: 5, kind: input, shape index: {}]
  %s6 = inlined_call_operand.vmem [shape: f32[32,32], index: 6, kind: input, shape index: {}]
  %s7 = inlined_call_operand.vmem [shape: f32[4,8], index: 7, kind: input, shape index: {}]
  %s8 = inlined_call_operand.vmem [shape: f32[4,8], index: 8, kind: input, shape index: {}]
  %s9 = inlined_call_operand.vmem [shape: f32[1,32], index: 9, kind: input, shape index: {}]
  %s10 = inlined_call_operand.vmem [shape: f32[2,16], index: 10, kind: input, shape index: {}]
  %s11 = inlined_call_operand.vmem [shape: f32[32,16], index: 11, kind: input, shape index: {}]
  %s12 = inlined_call_operand.vmem [shape: f32[1,16], index: 12, kind: input, shape index: {}]
  %s13 = inlined_call_operand.hbm [shape: f32[1,16], index: 13, kind: input, shape index: {}]
  %s14 = inlined_call_operand.hbm [shape: f32[1,16], index: 14, kind: input, shape index: {}]
  %s15 = inlined_call_operand.hbm [shape: f32[1,16], index: 15, kind: input, shape index: {}]
  %s16 = inlined_call_operand.vmem [shape: f32[1,16], index: 16, kind: input, shape index: {}]
  %s17 = inlined_call_operand.hbm [shape: f32[2,16], index: 17, kind: output, shape index: {}]
  %s18 = sld [smem:[#allocation0]]
  $region90: #{gat_forward.1} parent=0
    _
  %s20 = ssub.s32 1, %s18
  %s21 = scalar_select 0, %s20, %s18
  $region1: #{gat_forward.1} parent=0
    #allocation2 [shape = 'u8[512]{0}', space=vmem, size = 0x400, scoped, tag = 'input window, operand 13, single buffered']
    #allocation3 [shape = 's32[1]{0}', space=sflag, size = 0x4, scoped, tag = 'scoped memory for gat_forward.1']
    #allocation4 [shape = 's32[1]{0}', space=sflag, size = 0x4, scoped, tag = 'scoped memory for gat_forward.1']
    #allocation5 [shape = 'u8[512]{0}', space=vmem, size = 0x400, scoped, tag = 'input window, operand 14, single buffered']
    #allocation6 [shape = 's32[1]{0}', space=sflag, size = 0x4, scoped, tag = 'scoped memory for gat_forward.1']
    #allocation7 [shape = 'u8[512]{0}', space=vmem, size = 0x400, scoped, tag = 'input window, operand 15, single buffered']
    #allocation8 [shape = 'u8[1024]{0}', space=vmem, size = 0x400, scoped, tag = 'output window, operand 0, single buffered']
    %22 = vsyncpa [#allocation3], 0
    %23 = vsyncpa [#allocation6], 0
    %24 = vsyncpa [#allocation4], 0
    // Predicated region
    $region2: #{gat_forward.1} parent=1 // pred_check
      _
    $region3: #{gat_forward.1} parent=1 // pred_check_branch
      %26 = sbr.rel (0) target = $region5
    $region4: #{gat_forward.1} parent=1 // pred_region
      _
    $region5: #{gat_forward.1} parent=1 // pred_fallthru
      _
    // Predicated region
    $region6: #{gat_forward.1} parent=1 // pred_check
      _
    $region7: #{gat_forward.1} parent=1 // pred_check_branch
      %28 = sbr.rel (0) target = $region9
    $region8: #{gat_forward.1} parent=1 // pred_region
      _
    $region9: #{gat_forward.1} parent=1 // pred_fallthru
      _
    // Predicated region
    $region10: #{gat_forward.1} parent=1 // pred_check
      _
    $region11: #{gat_forward.1} parent=1 // pred_check_branch
      %30 = sbr.rel (0) target = $region13
    $region12: #{gat_forward.1} parent=1 // pred_region
      _
    $region13: #{gat_forward.1} parent=1 // pred_fallthru
      _
    // Predicated region
    $region14: #{gat_forward.1} parent=1 // pred_check
      _
    $region15: #{gat_forward.1} parent=1 // pred_check_branch
      %32 = sbr.rel (0) target = $region17
    $region16: #{gat_forward.1} parent=1 // pred_region
      _
    $region17: #{gat_forward.1} parent=1 // pred_fallthru
      _
    // Predicated region
    $region18: #{gat_forward.1} parent=1 // pred_check
      _
    $region19: #{gat_forward.1} parent=1 // pred_check_branch
      %34 = sbr.rel (0) target = $region21
    $region20: #{gat_forward.1} parent=1 // pred_region
      _
    $region21: #{gat_forward.1} parent=1 // pred_fallthru
      _
    // Predicated region
    $region22: #{gat_forward.1} parent=1 // pred_check
      _
    $region23: #{gat_forward.1} parent=1 // pred_check_branch
      %36 = sbr.rel (0) target = $region25
    $region24: #{gat_forward.1} parent=1 // pred_region
      _
    $region25: #{gat_forward.1} parent=1 // pred_fallthru
      _
    // Predicated region
    $region26: #{gat_forward.1} parent=1 // pred_check
      _
    $region27: #{gat_forward.1} parent=1 // pred_check_branch
      %38 = sbr.rel (0) target = $region29
    $region28: #{gat_forward.1} parent=1 // pred_region
      _
    $region29: #{gat_forward.1} parent=1 // pred_fallthru
      _
    // Predicated region
    $region30: #{gat_forward.1} parent=1 // pred_check
      _
    $region31: #{gat_forward.1} parent=1 // pred_check_branch
      %40 = sbr.rel (0) target = $region33
    $region32: #{gat_forward.1} parent=1 // pred_region
      _
    $region33: #{gat_forward.1} parent=1 // pred_fallthru
      _
    // Predicated region
    $region34: #{gat_forward.1} parent=1 // pred_check
      _
    $region35: #{gat_forward.1} parent=1 // pred_check_branch
      %42 = sbr.rel (0) target = $region37
    $region36: #{gat_forward.1} parent=1 // pred_region
      _
    $region37: #{gat_forward.1} parent=1 // pred_fallthru
      _
    // Predicated region
    $region38: #{gat_forward.1} parent=1 // pred_check
      _
    $region39: #{gat_forward.1} parent=1 // pred_check_branch
      %44 = sbr.rel (0) target = $region41
    $region40: #{gat_forward.1} parent=1 // pred_region
      _
    $region41: #{gat_forward.1} parent=1 // pred_fallthru
      _
    // Predicated region
    $region42: #{gat_forward.1} parent=1 // pred_check
      _
    $region43: #{gat_forward.1} parent=1 // pred_check_branch
      %46 = sbr.rel (0) target = $region45
    $region44: #{gat_forward.1} parent=1 // pred_region
      _
    $region45: #{gat_forward.1} parent=1 // pred_fallthru
      _
    // Predicated region
    $region46: #{gat_forward.1} parent=1 // pred_check
      _
    $region47: #{gat_forward.1} parent=1 // pred_check_branch
      %48 = sbr.rel (0) target = $region49
    $region48: #{gat_forward.1} parent=1 // pred_region
      _
    $region49: #{gat_forward.1} parent=1 // pred_fallthru
      _
    // Predicated region
    $region50: #{gat_forward.1} parent=1 // pred_check
      _
    $region51: #{gat_forward.1} parent=1 // pred_check_branch
      %50 = sbr.rel (0) target = $region53
    $region52: #{gat_forward.1} parent=1 // pred_region
      _
    $region53: #{gat_forward.1} parent=1 // pred_fallthru
      _
    // Predicated region
    $region54: #{gat_forward.1} parent=1 // pred_check
      _
    $region55: #{gat_forward.1} parent=1 // pred_check_branch
      %52 = sbr.rel (0) target = $region57
    $region56: #{gat_forward.1} parent=1 // pred_region
      %s54 = ssub.s32 16, 16
      %55 = vsyncadd [#allocation3], %s54
      %s57 = sshll.u32 [#allocation2], 4
      %s58 = int_to_ptr.vmem [resolvable:$true] %s57
      %60 = dma.hbm_to_vmem [thread:$0]  %s13, 16, %s58, [#allocation3]
    $region57: #{gat_forward.1} parent=1 // pred_fallthru
      _
    // Predicated region
    $region58: #{gat_forward.1} parent=1 // pred_check
      _
    $region59: #{gat_forward.1} parent=1 // pred_check_branch
      %62 = sbr.rel (0) target = $region61
    $region60: #{gat_forward.1} parent=1 // pred_region
      %s64 = ssub.s32 16, 16
      %65 = vsyncadd [#allocation6], %s64
      %s67 = sshll.u32 [#allocation5], 4
      %s68 = int_to_ptr.vmem [resolvable:$true] %s67
      %70 = dma.hbm_to_vmem [thread:$0]  %s14, 16, %s68, [#allocation6]
    $region61: #{gat_forward.1} parent=1 // pred_fallthru
      _
    // Predicated region
    $region62: #{gat_forward.1} parent=1 // pred_check
      _
    $region63: #{gat_forward.1} parent=1 // pred_check_branch
      %72 = sbr.rel (0) target = $region65
    $region64: #{gat_forward.1} parent=1 // pred_region
      %s74 = ssub.s32 16, 16
      %75 = vsyncadd [#allocation6], %s74
      %s77 = sshll.u32 [#allocation7], 4
      %s78 = int_to_ptr.vmem [resolvable:$true] %s77
      %80 = dma.hbm_to_vmem [thread:$0]  %s15, 16, %s78, [#allocation6]
    $region65: #{gat_forward.1} parent=1 // pred_fallthru
      _
    // Predicated region
    $region66: #{gat_forward.1} parent=1 // pred_check
      _
    $region67: #{gat_forward.1} parent=1 // pred_check_branch
      %82 = sbr.rel (0) target = $region69
    $region68: #{gat_forward.1} parent=1 // pred_region
      _
    $region69: #{gat_forward.1} parent=1 // pred_fallthru
      _
    // Predicated region
    $region70: #{gat_forward.1} parent=1 // pred_check
      _
    $region71: #{gat_forward.1} parent=1 // pred_check_branch
      %84 = sbr.rel (0) target = $region73
    $region72: #{gat_forward.1} parent=1 // pred_region
      %85 = dma.done [#allocation3], 16
    $region73: #{gat_forward.1} parent=1 // pred_fallthru
      _
    // Predicated region
    $region74: #{gat_forward.1} parent=1 // pred_check
      _
    $region75: #{gat_forward.1} parent=1 // pred_check_branch
      %87 = sbr.rel (0) target = $region77
    $region76: #{gat_forward.1} parent=1 // pred_region
      %88 = dma.done [#allocation6], 16
    $region77: #{gat_forward.1} parent=1 // pred_fallthru
      _
    // Predicated region
    $region78: #{gat_forward.1} parent=1 // pred_check
      _
    $region79: #{gat_forward.1} parent=1 // pred_check_branch
      %90 = sbr.rel (0) target = $region81
    $region80: #{gat_forward.1} parent=1 // pred_region
      %91 = dma.done [#allocation6], 16
    $region81: #{gat_forward.1} parent=1 // pred_fallthru
      _
    %v92 = vld [vmem:[%s1] sm:$0xff]
    %v93 = vld [vmem:[%s1 + $0x8] sm:$0xff]
    %v94 = vld [vmem:[%s0] sm:$0xff]
    %v95 = vld [vmem:[%s0 + $0x8] sm:$0xff]
    %v96 = vld [vmem:[%s2] sm:$0xff]
    %v97 = vld [vmem:[%s3] sm:$0xf]
    %v98 = vld [vmem:[%s4] sm:$0xf]
    %v99 = vld [vmem:[%s5] sm:$0x1]
    %vm100 = vcmask 64512
    %v102 = vsel %vm100, %v94, 0
    %v105 = vsel %vm100, %v95, 0
    %107 = vmatprep.subr.mxu0 0.0
    %108 = vmatpush1.msra.mxu0 %v96
    %109 = vmatprep.subr.mxu0 0.0
    %110 = vmatpush1.msra.mxu0 0.0
    %111 = vmatprep.subr.mxu0 0.0
    %112 = vmatpush1.msra.mxu0 0.0
    %113 = vmatprep.subr.mxu0 0.0
    %114 = vmatpush1.msra.mxu0 0.0
    %115 = vmatprep.subr.mxu0 0.0
    %116 = vmatpush1.msra.mxu0 0.0
    %117 = vmatprep.subr.mxu0 0.0
    %118 = vmatpush1.msra.mxu0 0.0
    %119 = vmatprep.subr.mxu0 0.0
    %120 = vmatpush1.msra.mxu0 0.0
    %121 = vmatprep.subr.mxu0 0.0
    %122 = vmatpush1.msra.mxu0 0.0
    %123 = vmatprep.subr.mxu0 0.0
    %124 = vmatpush1.msra.mxu0 0.0
    %125 = vmatprep.subr.mxu0 0.0
    %126 = vmatpush1.msra.mxu0 0.0
    %127 = vmatprep.subr.mxu0 0.0
    %128 = vmatpush1.msra.mxu0 0.0
    %129 = vmatprep.subr.mxu0 0.0
    %130 = vmatpush1.msra.mxu0 0.0
    %131 = vmatprep.subr.mxu0 0.0
    %132 = vmatpush1.msra.mxu0 0.0
    %133 = vmatprep.subr.mxu0 0.0
    %134 = vmatpush1.msra.mxu0 0.0
    %135 = vmatprep.subr.mxu0 0.0
    %136 = vmatpush1.msra.mxu0 0.0
    %137 = vmatprep.subr.mxu0 0.0
    %138 = vmatpush1.msra.mxu0 0.0
    %139 = vmatprep.subr.mxu0 0.0
    %140 = vmatpush1.msra.mxu0 0.0
    %141 = vmatprep.subr.mxu0 0.0
    %142 = vmatpush1.msra.mxu0 0.0
    %143 = vmatprep.subr.mxu0 0.0
    %144 = vmatpush1.msra.mxu0 0.0
    %145 = vmatprep.subr.mxu0 0.0
    %146 = vmatpush1.msra.mxu0 0.0
    %147 = vmatprep.subr.mxu0 0.0
    %148 = vmatpush1.msra.mxu0 0.0
    %149 = vmatprep.subr.mxu0 0.0
    %150 = vmatpush1.msra.mxu0 0.0
    %151 = vmatprep.subr.mxu0 0.0
    %152 = vmatpush1.msra.mxu0 0.0
    %153 = vmatprep.subr.mxu0 0.0
    %154 = vmatpush1.msra.mxu0 0.0
    %155 = vmatprep.subr.mxu0 0.0
    %156 = vmatpush1.msra.mxu0 0.0
    %157 = vmatprep.subr.mxu0 0.0
    %158 = vmatpush1.msra.mxu0 0.0
    %159 = vmatprep.subr.mxu0 0.0
    %160 = vmatpush1.msra.mxu0 0.0
    %161 = vmatprep.subr.mxu0 0.0
    %162 = vmatpush1.msra.mxu0 0.0
    %163 = vmatprep.subr.mxu0 0.0
    %164 = vmatpush1.msra.mxu0 0.0
    %165 = vmatprep.subr.mxu0 0.0
    %166 = vmatpush1.msra.mxu0 0.0
    %167 = vmatprep.subr.mxu0 0.0
    %168 = vmatpush1.msra.mxu0 0.0
    %169 = vmatprep.subr.mxu0 0.0
    %170 = vmatpush1.msra.mxu0 0.0
    %171 = vmatprep.mubr.f32.mxu0 0.0
    %172 = vmatmul.mubr.f32.gmra.mrb[0].mxu0 %v102
    %v173 = vpop.f32.mrb[0].mxu0
    %v174 = vadd.f32 0.0, %v173
    %v175 = vpop.f32.mrb[0].mxu0
    %176 = vmatprep.mubr.f32.mxu0 0.0
    %177 = vmatmul.mubr.f32.gmra.mrb[0].mxu0 %v105
    %v178 = vpop.f32.mrb[0].mxu0
    %v179 = vadd.f32 0.0, %v178
    %v180 = vpop.f32.mrb[0].mxu0
    %181 = vdwg.mxu0
    %v182 = vlaneseq
    %v183 = vshrl.u32 %v182, 7
    %v184 = vsub.s32 0, %v183
    %v185 = vrot.slane %v98, %v184
    %v186 = vmul.f32 %v174, %v185
    %v187 = vmul.f32 %v179, %v185
    %v188 = vsel %vm100, %v186, 0.0
    %189 = vadd.xlane.f32.xlu0 %v188
    %v190 = vpop.xlane.xlu0 %189
    %v191 = vsel %vm100, %v187, 0.0
    %192 = vadd.xlane.f32.xlu0 %v191
    %v193 = vpop.xlane.xlu0 %192
    %v195 = vsel %vm100, %v97, 0
    %v198 = vsel %vm100, %v174, 0
    %v201 = vsel %vm100, %v179, 0
    %203 = vmatprep.subr.mxu0 0.0
    %204 = vmatpush1.xpose.msra.mxu0 %v198
    %205 = vmatprep.subr.mxu0 0.0
    %206 = vmatpush1.xpose.msra.mxu0 %v201
    %207 = vmatprep.subr.mxu0 0.0
    %208 = vmatpush1.xpose.msra.mxu0 0.0
    %209 = vmatprep.subr.mxu0 0.0
    %210 = vmatpush1.xpose.msra.mxu0 0.0
    %211 = vmatprep.subr.mxu0 0.0
    %212 = vmatpush1.xpose.msra.mxu0 0.0
    %213 = vmatprep.subr.mxu0 0.0
    %214 = vmatpush1.xpose.msra.mxu0 0.0
    %215 = vmatprep.subr.mxu0 0.0
    %216 = vmatpush1.xpose.msra.mxu0 0.0
    %217 = vmatprep.subr.mxu0 0.0
    %218 = vmatpush1.xpose.msra.mxu0 0.0
    %219 = vmatprep.subr.mxu0 0.0
    %220 = vmatpush1.xpose.msra.mxu0 0.0
    %221 = vmatprep.subr.mxu0 0.0
    %222 = vmatpush1.xpose.msra.mxu0 0.0
    %223 = vmatprep.subr.mxu0 0.0
    %224 = vmatpush1.xpose.msra.mxu0 0.0
    %225 = vmatprep.subr.mxu0 0.0
    %226 = vmatpush1.xpose.msra.mxu0 0.0
    %227 = vmatprep.subr.mxu0 0.0
    %228 = vmatpush1.xpose.msra.mxu0 0.0
    %229 = vmatprep.subr.mxu0 0.0
    %230 = vmatpush1.xpose.msra.mxu0 0.0
    %231 = vmatprep.subr.mxu0 0.0
    %232 = vmatpush1.xpose.msra.mxu0 0.0
    %233 = vmatprep.subr.mxu0 0.0
    %234 = vmatpush1.xpose.msra.mxu0 0.0
    %235 = vmatprep.subr.mxu0 0.0
    %236 = vmatpush1.xpose.msra.mxu0 0.0
    %237 = vmatprep.subr.mxu0 0.0
    %238 = vmatpush1.xpose.msra.mxu0 0.0
    %239 = vmatprep.subr.mxu0 0.0
    %240 = vmatpush1.xpose.msra.mxu0 0.0
    %241 = vmatprep.subr.mxu0 0.0
    %242 = vmatpush1.xpose.msra.mxu0 0.0
    %243 = vmatprep.subr.mxu0 0.0
    %244 = vmatpush1.xpose.msra.mxu0 0.0
    %245 = vmatprep.subr.mxu0 0.0
    %246 = vmatpush1.xpose.msra.mxu0 0.0
    %247 = vmatprep.subr.mxu0 0.0
    %248 = vmatpush1.xpose.msra.mxu0 0.0
    %249 = vmatprep.subr.mxu0 0.0
    %250 = vmatpush1.xpose.msra.mxu0 0.0
    %251 = vmatprep.subr.mxu0 0.0
    %252 = vmatpush1.xpose.msra.mxu0 0.0
    %253 = vmatprep.subr.mxu0 0.0
    %254 = vmatpush1.xpose.msra.mxu0 0.0
    %255 = vmatprep.subr.mxu0 0.0
    %256 = vmatpush1.xpose.msra.mxu0 0.0
    %257 = vmatprep.subr.mxu0 0.0
    %258 = vmatpush1.xpose.msra.mxu0 0.0
    %259 = vmatprep.subr.mxu0 0.0
    %260 = vmatpush1.xpose.msra.mxu0 0.0
    %261 = vmatprep.subr.mxu0 0.0
    %262 = vmatpush1.xpose.msra.mxu0 0.0
    %263 = vmatprep.subr.mxu0 0.0
    %264 = vmatpush1.xpose.msra.mxu0 0.0
    %265 = vmatprep.subr.mxu0 0.0
    %266 = vmatpush1.xpose.msra.mxu0 0.0
    %267 = vmatprep.mubr.f32.mxu0 0.0
    %268 = vmatmul.mubr.f32.gmra.mrb[0].mxu0 %v195
    %v269 = vpop.f32.mrb[0].mxu0
    %v270 = vadd.f32 0.0, %v269
    %v271 = vpop.f32.mrb[0].mxu0
    %272 = vdwg.mxu0
    %v273 = vlaneseq
    %v274 = vshrl.u32 %v273, 7
    %v275 = vsub.s32 0, %v274
    %v276 = vrot.slane %v270, %v275
    %v277 = vadd.f32 %v190, %v276
    %v278 = vadd.f32 %v193, %v276
    %vm279 = vcmp.ge.f32.partialorder %v277, 0.0
    %vm280 = vcmp.ge.f32.partialorder %v278, 0.0
    %v281 = vmul.f32 %v277, 0.2
    %v282 = vmul.f32 %v278, 0.2
    %v283 = vsel %vm279, %v277, %v281
    %v284 = vsel %vm280, %v278, %v282
    %v285 = vadd.f32 %v283, %v92
    %v286 = vadd.f32 %v284, %v93
    %vm287 = vcmask 130048
    %v288 = vsel %vm287, %v285, -inf
    %289 = vmax.xlane.f32.xlu0 %v288
    %v290 = vpop.xlane.xlu0 %289
    %v291 = vsel %vm287, %v286, -inf
    %292 = vmax.xlane.f32.xlu0 %v291
    %v293 = vpop.xlane.xlu0 %292
    %v294 = vsub.f32 %v285, %v290
    %v295 = vsub.f32 %v286, %v293
    %v296 = vmul.f32 %v294, 1.442695
    %v297 = vpow.pop %v296
    %v298 = vmul.f32 %v295, 1.442695
    %v299 = vpow.pop %v298
    %v300 = vsel %vm287, %v297, 0.0
    %301 = vadd.xlane.f32.xlu0 %v300
    %v302 = vpop.xlane.xlu0 %301
    %v303 = vsel %vm287, %v299, 0.0
    %304 = vadd.xlane.f32.xlu0 %v303
    %v305 = vpop.xlane.xlu0 %304
    %v306 = vmax.f32 %v302, 1e-30
    %v307 = vmax.f32 %v305, 1e-30
    %v308 = vrcp.pop %v306
    %v309 = vmul.f32 %v297, %v308
    %v310 = vrcp.pop %v307
    %v311 = vmul.f32 %v299, %v310
    %v313 = vsel %vm287, %v309, 0
    %v316 = vsel %vm287, %v311, 0
    %318 = vmatprep.subr.mxu0 0.0
    %319 = vmatpush1.msra.mxu0 %v174
    %320 = vmatprep.subr.mxu0 0.0
    %321 = vmatpush1.msra.mxu0 %v179
    %322 = vmatprep.subr.mxu0 0.0
    %323 = vmatpush1.msra.mxu0 0.0
    %324 = vmatprep.subr.mxu0 0.0
    %325 = vmatpush1.msra.mxu0 0.0
    %326 = vmatprep.subr.mxu0 0.0
    %327 = vmatpush1.msra.mxu0 0.0
    %328 = vmatprep.subr.mxu0 0.0
    %329 = vmatpush1.msra.mxu0 0.0
    %330 = vmatprep.subr.mxu0 0.0
    %331 = vmatpush1.msra.mxu0 0.0
    %332 = vmatprep.subr.mxu0 0.0
    %333 = vmatpush1.msra.mxu0 0.0
    %334 = vmatprep.subr.mxu0 0.0
    %335 = vmatpush1.msra.mxu0 0.0
    %336 = vmatprep.subr.mxu0 0.0
    %337 = vmatpush1.msra.mxu0 0.0
    %338 = vmatprep.subr.mxu0 0.0
    %339 = vmatpush1.msra.mxu0 0.0
    %340 = vmatprep.subr.mxu0 0.0
    %341 = vmatpush1.msra.mxu0 0.0
    %342 = vmatprep.subr.mxu0 0.0
    %343 = vmatpush1.msra.mxu0 0.0
    %344 = vmatprep.subr.mxu0 0.0
    %345 = vmatpush1.msra.mxu0 0.0
    %346 = vmatprep.subr.mxu0 0.0
    %347 = vmatpush1.msra.mxu0 0.0
    %348 = vmatprep.subr.mxu0 0.0
    %349 = vmatpush1.msra.mxu0 0.0
    %350 = vmatprep.subr.mxu0 0.0
    %351 = vmatpush1.msra.mxu0 0.0
    %352 = vmatprep.subr.mxu0 0.0
    %353 = vmatpush1.msra.mxu0 0.0
    %354 = vmatprep.subr.mxu0 0.0
    %355 = vmatpush1.msra.mxu0 0.0
    %356 = vmatprep.subr.mxu0 0.0
    %357 = vmatpush1.msra.mxu0 0.0
    %358 = vmatprep.subr.mxu0 0.0
    %359 = vmatpush1.msra.mxu0 0.0
    %360 = vmatprep.subr.mxu0 0.0
    %361 = vmatpush1.msra.mxu0 0.0
    %362 = vmatprep.subr.mxu0 0.0
    %363 = vmatpush1.msra.mxu0 0.0
    %364 = vmatprep.subr.mxu0 0.0
    %365 = vmatpush1.msra.mxu0 0.0
    %366 = vmatprep.subr.mxu0 0.0
    %367 = vmatpush1.msra.mxu0 0.0
    %368 = vmatprep.subr.mxu0 0.0
    %369 = vmatpush1.msra.mxu0 0.0
    %370 = vmatprep.subr.mxu0 0.0
    %371 = vmatpush1.msra.mxu0 0.0
    %372 = vmatprep.subr.mxu0 0.0
    %373 = vmatpush1.msra.mxu0 0.0
    %374 = vmatprep.subr.mxu0 0.0
    %375 = vmatpush1.msra.mxu0 0.0
    %376 = vmatprep.subr.mxu0 0.0
    %377 = vmatpush1.msra.mxu0 0.0
    %378 = vmatprep.subr.mxu0 0.0
    %379 = vmatpush1.msra.mxu0 0.0
    %380 = vmatprep.subr.mxu0 0.0
    %381 = vmatpush1.msra.mxu0 0.0
    %382 = vmatprep.mubr.f32.mxu0 0.0
    %383 = vmatmul.mubr.f32.gmra.mrb[0].mxu0 %v313
    %v384 = vpop.f32.mrb[0].mxu0
    %v385 = vadd.f32 0.0, %v384
    %v386 = vpop.f32.mrb[0].mxu0
    %387 = vmatprep.mubr.f32.mxu0 0.0
    %388 = vmatmul.mubr.f32.gmra.mrb[0].mxu0 %v316
    %v389 = vpop.f32.mrb[0].mxu0
    %v390 = vadd.f32 0.0, %v389
    %v391 = vpop.f32.mrb[0].mxu0
    %392 = vdwg.mxu0
    %v393 = vlaneseq
    %v394 = vshrl.u32 %v393, 7
    %v395 = vsub.s32 1, %v394
    %v396 = vrot.slane %v98, %v395
    %398 = vrot.lane.b32.xlu0 %v396, 8
    %v399 = vpop.permute.xlu0 %398
    %v401 = vmul.f32 %v174, %v399
    %v402 = vmul.f32 %v179, %v399
    %405 = vrot.lane.b32.xlu0 %v401, 120
    %v406 = vpop.permute.xlu0 %405
    %407 = vrot.lane.b32.xlu0 %v402, 120
    %v408 = vpop.permute.xlu0 %407
    %v411 = vsel %vm100, %v406, 0.0
    %412 = vadd.xlane.f32.xlu0 %v411
    %v413 = vpop.xlane.xlu0 %412
    %v414 = vsel %vm100, %v408, 0.0
    %415 = vadd.xlane.f32.xlu0 %v414
    %v416 = vpop.xlane.xlu0 %415
    %v417 = vrot.slane %v97, 1
    %418 = vrot.lane.b32.xlu0 %v174, 120
    %v419 = vpop.permute.xlu0 %418
    %420 = vrot.lane.b32.xlu0 %v179, 120
    %v421 = vpop.permute.xlu0 %420
    %v422 = vsel %vm100, %v417, 0
    %v424 = vsel %vm100, %v419, 0
    %v426 = vsel %vm100, %v421, 0
    %428 = vmatprep.subr.mxu0 0.0
    %429 = vmatpush1.xpose.msra.mxu0 %v424
    %430 = vmatprep.subr.mxu0 0.0
    %431 = vmatpush1.xpose.msra.mxu0 %v426
    %432 = vmatprep.subr.mxu0 0.0
    %433 = vmatpush1.xpose.msra.mxu0 0.0
    %434 = vmatprep.subr.mxu0 0.0
    %435 = vmatpush1.xpose.msra.mxu0 0.0
    %436 = vmatprep.subr.mxu0 0.0
    %437 = vmatpush1.xpose.msra.mxu0 0.0
    %438 = vmatprep.subr.mxu0 0.0
    %439 = vmatpush1.xpose.msra.mxu0 0.0
    %440 = vmatprep.subr.mxu0 0.0
    %441 = vmatpush1.xpose.msra.mxu0 0.0
    %442 = vmatprep.subr.mxu0 0.0
    %443 = vmatpush1.xpose.msra.mxu0 0.0
    %444 = vmatprep.subr.mxu0 0.0
    %445 = vmatpush1.xpose.msra.mxu0 0.0
    %446 = vmatprep.subr.mxu0 0.0
    %447 = vmatpush1.xpose.msra.mxu0 0.0
    %448 = vmatprep.subr.mxu0 0.0
    %449 = vmatpush1.xpose.msra.mxu0 0.0
    %450 = vmatprep.subr.mxu0 0.0
    %451 = vmatpush1.xpose.msra.mxu0 0.0
    %452 = vmatprep.subr.mxu0 0.0
    %453 = vmatpush1.xpose.msra.mxu0 0.0
    %454 = vmatprep.subr.mxu0 0.0
    %455 = vmatpush1.xpose.msra.mxu0 0.0
    %456 = vmatprep.subr.mxu0 0.0
    %457 = vmatpush1.xpose.msra.mxu0 0.0
    %458 = vmatprep.subr.mxu0 0.0
    %459 = vmatpush1.xpose.msra.mxu0 0.0
    %460 = vmatprep.subr.mxu0 0.0
    %461 = vmatpush1.xpose.msra.mxu0 0.0
    %462 = vmatprep.subr.mxu0 0.0
    %463 = vmatpush1.xpose.msra.mxu0 0.0
    %464 = vmatprep.subr.mxu0 0.0
    %465 = vmatpush1.xpose.msra.mxu0 0.0
    %466 = vmatprep.subr.mxu0 0.0
    %467 = vmatpush1.xpose.msra.mxu0 0.0
    %468 = vmatprep.subr.mxu0 0.0
    %469 = vmatpush1.xpose.msra.mxu0 0.0
    %470 = vmatprep.subr.mxu0 0.0
    %471 = vmatpush1.xpose.msra.mxu0 0.0
    %472 = vmatprep.subr.mxu0 0.0
    %473 = vmatpush1.xpose.msra.mxu0 0.0
    %474 = vmatprep.subr.mxu0 0.0
    %475 = vmatpush1.xpose.msra.mxu0 0.0
    %476 = vmatprep.subr.mxu0 0.0
    %477 = vmatpush1.xpose.msra.mxu0 0.0
    %478 = vmatprep.subr.mxu0 0.0
    %479 = vmatpush1.xpose.msra.mxu0 0.0
    %480 = vmatprep.subr.mxu0 0.0
    %481 = vmatpush1.xpose.msra.mxu0 0.0
    %482 = vmatprep.subr.mxu0 0.0
    %483 = vmatpush1.xpose.msra.mxu0 0.0
    %484 = vmatprep.subr.mxu0 0.0
    %485 = vmatpush1.xpose.msra.mxu0 0.0
    %486 = vmatprep.subr.mxu0 0.0
    %487 = vmatpush1.xpose.msra.mxu0 0.0
    %488 = vmatprep.subr.mxu0 0.0
    %489 = vmatpush1.xpose.msra.mxu0 0.0
    %490 = vmatprep.subr.mxu0 0.0
    %491 = vmatpush1.xpose.msra.mxu0 0.0
    %492 = vmatprep.mubr.f32.mxu0 0.0
    %493 = vmatmul.mubr.f32.gmra.mrb[0].mxu0 %v422
    %v494 = vpop.f32.mrb[0].mxu0
    %v495 = vadd.f32 0.0, %v494
    %v496 = vpop.f32.mrb[0].mxu0
    %497 = vdwg.mxu0
    %v498 = vlaneseq
    %v499 = vshrl.u32 %v498, 7
    %v500 = vsub.s32 0, %v499
    %v501 = vrot.slane %v495, %v500
    %v502 = vadd.f32 %v413, %v501
    %v503 = vadd.f32 %v416, %v501
    %vm504 = vcmp.ge.f32.partialorder %v502, 0.0
    %vm505 = vcmp.ge.f32.partialorder %v503, 0.0
    %v506 = vmul.f32 %v502, 0.2
    %v507 = vmul.f32 %v503, 0.2
    %v508 = vsel %vm504, %v502, %v506
    %v509 = vsel %vm505, %v503, %v507
    %v510 = vadd.f32 %v508, %v92
    %v511 = vadd.f32 %v509, %v93
    %v512 = vsel %vm287, %v510, -inf
    %513 = vmax.xlane.f32.xlu0 %v512
    %v514 = vpop.xlane.xlu0 %513
    %v515 = vsel %vm287, %v511, -inf
    %516 = vmax.xlane.f32.xlu0 %v515
    %v517 = vpop.xlane.xlu0 %516
    %v518 = vsub.f32 %v510, %v514
    %v519 = vsub.f32 %v511, %v517
    %v520 = vmul.f32 %v518, 1.442695
    %v521 = vpow.pop %v520
    %v522 = vmul.f32 %v519, 1.442695
    %v523 = vpow.pop %v522
    %v524 = vsel %vm287, %v521, 0.0
    %525 = vadd.xlane.f32.xlu0 %v524
    %v526 = vpop.xlane.xlu0 %525
    %v527 = vsel %vm287, %v523, 0.0
    %528 = vadd.xlane.f32.xlu0 %v527
    %v529 = vpop.xlane.xlu0 %528
    %v530 = vmax.f32 %v526, 1e-30
    %v531 = vmax.f32 %v529, 1e-30
    %v532 = vrcp.pop %v530
    %v533 = vmul.f32 %v521, %v532
    %v534 = vrcp.pop %v531
    %v535 = vmul.f32 %v523, %v534
    %v539 = vsel %vm287, %v533, 0
    %v542 = vsel %vm287, %v535, 0
    %544 = vmatprep.subr.mxu0 0.0
    %545 = vmatpush1.msra.mxu0 %v419
    %546 = vmatprep.subr.mxu0 0.0
    %547 = vmatpush1.msra.mxu0 %v421
    %548 = vmatprep.subr.mxu0 0.0
    %549 = vmatpush1.msra.mxu0 0.0
    %550 = vmatprep.subr.mxu0 0.0
    %551 = vmatpush1.msra.mxu0 0.0
    %552 = vmatprep.subr.mxu0 0.0
    %553 = vmatpush1.msra.mxu0 0.0
    %554 = vmatprep.subr.mxu0 0.0
    %555 = vmatpush1.msra.mxu0 0.0
    %556 = vmatprep.subr.mxu0 0.0
    %557 = vmatpush1.msra.mxu0 0.0
    %558 = vmatprep.subr.mxu0 0.0
    %559 = vmatpush1.msra.mxu0 0.0
    %560 = vmatprep.subr.mxu0 0.0
    %561 = vmatpush1.msra.mxu0 0.0
    %562 = vmatprep.subr.mxu0 0.0
    %563 = vmatpush1.msra.mxu0 0.0
    %564 = vmatprep.subr.mxu0 0.0
    %565 = vmatpush1.msra.mxu0 0.0
    %566 = vmatprep.subr.mxu0 0.0
    %567 = vmatpush1.msra.mxu0 0.0
    %568 = vmatprep.subr.mxu0 0.0
    %569 = vmatpush1.msra.mxu0 0.0
    %570 = vmatprep.subr.mxu0 0.0
    %571 = vmatpush1.msra.mxu0 0.0
    %572 = vmatprep.subr.mxu0 0.0
    %573 = vmatpush1.msra.mxu0 0.0
    %574 = vmatprep.subr.mxu0 0.0
    %575 = vmatpush1.msra.mxu0 0.0
    %576 = vmatprep.subr.mxu0 0.0
    %577 = vmatpush1.msra.mxu0 0.0
    %578 = vmatprep.subr.mxu0 0.0
    %579 = vmatpush1.msra.mxu0 0.0
    %580 = vmatprep.subr.mxu0 0.0
    %581 = vmatpush1.msra.mxu0 0.0
    %582 = vmatprep.subr.mxu0 0.0
    %583 = vmatpush1.msra.mxu0 0.0
    %584 = vmatprep.subr.mxu0 0.0
    %585 = vmatpush1.msra.mxu0 0.0
    %586 = vmatprep.subr.mxu0 0.0
    %587 = vmatpush1.msra.mxu0 0.0
    %588 = vmatprep.subr.mxu0 0.0
    %589 = vmatpush1.msra.mxu0 0.0
    %590 = vmatprep.subr.mxu0 0.0
    %591 = vmatpush1.msra.mxu0 0.0
    %592 = vmatprep.subr.mxu0 0.0
    %593 = vmatpush1.msra.mxu0 0.0
    %594 = vmatprep.subr.mxu0 0.0
    %595 = vmatpush1.msra.mxu0 0.0
    %596 = vmatprep.subr.mxu0 0.0
    %597 = vmatpush1.msra.mxu0 0.0
    %598 = vmatprep.subr.mxu0 0.0
    %599 = vmatpush1.msra.mxu0 0.0
    %600 = vmatprep.subr.mxu0 0.0
    %601 = vmatpush1.msra.mxu0 0.0
    %602 = vmatprep.subr.mxu0 0.0
    %603 = vmatpush1.msra.mxu0 0.0
    %604 = vmatprep.subr.mxu0 0.0
    %605 = vmatpush1.msra.mxu0 0.0
    %606 = vmatprep.subr.mxu0 0.0
    %607 = vmatpush1.msra.mxu0 0.0
    %608 = vmatprep.mubr.f32.mxu0 0.0
    %609 = vmatmul.mubr.f32.gmra.mrb[0].mxu0 %v539
    %v610 = vpop.f32.mrb[0].mxu0
    %v611 = vadd.f32 0.0, %v610
    %v612 = vpop.f32.mrb[0].mxu0
    %613 = vmatprep.mubr.f32.mxu0 0.0
    %614 = vmatmul.mubr.f32.gmra.mrb[0].mxu0 %v542
    %v615 = vpop.f32.mrb[0].mxu0
    %v616 = vadd.f32 0.0, %v615
    %v617 = vpop.f32.mrb[0].mxu0
    %618 = vdwg.mxu0
    %v619 = vlaneseq
    %v620 = vshrl.u32 %v619, 7
    %v621 = vsub.s32 2, %v620
    %v622 = vrot.slane %v98, %v621
    %624 = vrot.lane.b32.xlu0 %v622, 16
    %v625 = vpop.permute.xlu0 %624
    %v627 = vmul.f32 %v174, %v625
    %v628 = vmul.f32 %v179, %v625
    %631 = vrot.lane.b32.xlu0 %v627, 112
    %v632 = vpop.permute.xlu0 %631
    %633 = vrot.lane.b32.xlu0 %v628, 112
    %v634 = vpop.permute.xlu0 %633
    %v637 = vsel %vm100, %v632, 0.0
    %638 = vadd.xlane.f32.xlu0 %v637
    %v639 = vpop.xlane.xlu0 %638
    %v640 = vsel %vm100, %v634, 0.0
    %641 = vadd.xlane.f32.xlu0 %v640
    %v642 = vpop.xlane.xlu0 %641
    %v643 = vrot.slane %v97, 2
    %644 = vrot.lane.b32.xlu0 %v174, 112
    %v645 = vpop.permute.xlu0 %644
    %646 = vrot.lane.b32.xlu0 %v179, 112
    %v647 = vpop.permute.xlu0 %646
    %v648 = vsel %vm100, %v643, 0
    %v650 = vsel %vm100, %v645, 0
    %v652 = vsel %vm100, %v647, 0
    %654 = vmatprep.subr.mxu0 0.0
    %655 = vmatpush1.xpose.msra.mxu0 %v650
    %656 = vmatprep.subr.mxu0 0.0
    %657 = vmatpush1.xpose.msra.mxu0 %v652
    %658 = vmatprep.subr.mxu0 0.0
    %659 = vmatpush1.xpose.msra.mxu0 0.0
    %660 = vmatprep.subr.mxu0 0.0
    %661 = vmatpush1.xpose.msra.mxu0 0.0
    %662 = vmatprep.subr.mxu0 0.0
    %663 = vmatpush1.xpose.msra.mxu0 0.0
    %664 = vmatprep.subr.mxu0 0.0
    %665 = vmatpush1.xpose.msra.mxu0 0.0
    %666 = vmatprep.subr.mxu0 0.0
    %667 = vmatpush1.xpose.msra.mxu0 0.0
    %668 = vmatprep.subr.mxu0 0.0
    %669 = vmatpush1.xpose.msra.mxu0 0.0
    %670 = vmatprep.subr.mxu0 0.0
    %671 = vmatpush1.xpose.msra.mxu0 0.0
    %672 = vmatprep.subr.mxu0 0.0
    %673 = vmatpush1.xpose.msra.mxu0 0.0
    %674 = vmatprep.subr.mxu0 0.0
    %675 = vmatpush1.xpose.msra.mxu0 0.0
    %676 = vmatprep.subr.mxu0 0.0
    %677 = vmatpush1.xpose.msra.mxu0 0.0
    %678 = vmatprep.subr.mxu0 0.0
    %679 = vmatpush1.xpose.msra.mxu0 0.0
    %680 = vmatprep.subr.mxu0 0.0
    %681 = vmatpush1.xpose.msra.mxu0 0.0
    %682 = vmatprep.subr.mxu0 0.0
    %683 = vmatpush1.xpose.msra.mxu0 0.0
    %684 = vmatprep.subr.mxu0 0.0
    %685 = vmatpush1.xpose.msra.mxu0 0.0
    %686 = vmatprep.subr.mxu0 0.0
    %687 = vmatpush1.xpose.msra.mxu0 0.0
    %688 = vmatprep.subr.mxu0 0.0
    %689 = vmatpush1.xpose.msra.mxu0 0.0
    %690 = vmatprep.subr.mxu0 0.0
    %691 = vmatpush1.xpose.msra.mxu0 0.0
    %692 = vmatprep.subr.mxu0 0.0
    %693 = vmatpush1.xpose.msra.mxu0 0.0
    %694 = vmatprep.subr.mxu0 0.0
    %695 = vmatpush1.xpose.msra.mxu0 0.0
    %696 = vmatprep.subr.mxu0 0.0
    %697 = vmatpush1.xpose.msra.mxu0 0.0
    %698 = vmatprep.subr.mxu0 0.0
    %699 = vmatpush1.xpose.msra.mxu0 0.0
    %700 = vmatprep.subr.mxu0 0.0
    %701 = vmatpush1.xpose.msra.mxu0 0.0
    %702 = vmatprep.subr.mxu0 0.0
    %703 = vmatpush1.xpose.msra.mxu0 0.0
    %704 = vmatprep.subr.mxu0 0.0
    %705 = vmatpush1.xpose.msra.mxu0 0.0
    %706 = vmatprep.subr.mxu0 0.0
    %707 = vmatpush1.xpose.msra.mxu0 0.0
    %708 = vmatprep.subr.mxu0 0.0
    %709 = vmatpush1.xpose.msra.mxu0 0.0
    %710 = vmatprep.subr.mxu0 0.0
    %711 = vmatpush1.xpose.msra.mxu0 0.0
    %712 = vmatprep.subr.mxu0 0.0
    %713 = vmatpush1.xpose.msra.mxu0 0.0
    %714 = vmatprep.subr.mxu0 0.0
    %715 = vmatpush1.xpose.msra.mxu0 0.0
    %716 = vmatprep.subr.mxu0 0.0
    %717 = vmatpush1.xpose.msra.mxu0 0.0
    %718 = vmatprep.mubr.f32.mxu0 0.0
    %719 = vmatmul.mubr.f32.gmra.mrb[0].mxu0 %v648
    %v720 = vpop.f32.mrb[0].mxu0
    %v721 = vadd.f32 0.0, %v720
    %v722 = vpop.f32.mrb[0].mxu0
    %723 = vdwg.mxu0
    %v724 = vlaneseq
    %v725 = vshrl.u32 %v724, 7
    %v726 = vsub.s32 0, %v725
    %v727 = vrot.slane %v721, %v726
    %v728 = vadd.f32 %v639, %v727
    %v729 = vadd.f32 %v642, %v727
    %vm730 = vcmp.ge.f32.partialorder %v728, 0.0
    %vm731 = vcmp.ge.f32.partialorder %v729, 0.0
    %v732 = vmul.f32 %v728, 0.2
    %v733 = vmul.f32 %v729, 0.2
    %v734 = vsel %vm730, %v728, %v732
    %v735 = vsel %vm731, %v729, %v733
    %v736 = vadd.f32 %v734, %v92
    %v737 = vadd.f32 %v735, %v93
    %v738 = vsel %vm287, %v736, -inf
    %739 = vmax.xlane.f32.xlu0 %v738
    %v740 = vpop.xlane.xlu0 %739
    %v741 = vsel %vm287, %v737, -inf
    %742 = vmax.xlane.f32.xlu0 %v741
    %v743 = vpop.xlane.xlu0 %742
    %v744 = vsub.f32 %v736, %v740
    %v745 = vsub.f32 %v737, %v743
    %v746 = vmul.f32 %v744, 1.442695
    %v747 = vpow.pop %v746
    %v748 = vmul.f32 %v745, 1.442695
    %v749 = vpow.pop %v748
    %v750 = vsel %vm287, %v747, 0.0
    %751 = vadd.xlane.f32.xlu0 %v750
    %v752 = vpop.xlane.xlu0 %751
    %v753 = vsel %vm287, %v749, 0.0
    %754 = vadd.xlane.f32.xlu0 %v753
    %v755 = vpop.xlane.xlu0 %754
    %v756 = vmax.f32 %v752, 1e-30
    %v757 = vmax.f32 %v755, 1e-30
    %v758 = vrcp.pop %v756
    %v759 = vmul.f32 %v747, %v758
    %v760 = vrcp.pop %v757
    %v761 = vmul.f32 %v749, %v760
    %v765 = vsel %vm287, %v759, 0
    %v768 = vsel %vm287, %v761, 0
    %770 = vmatprep.subr.mxu0 0.0
    %771 = vmatpush1.msra.mxu0 %v645
    %772 = vmatprep.subr.mxu0 0.0
    %773 = vmatpush1.msra.mxu0 %v647
    %774 = vmatprep.subr.mxu0 0.0
    %775 = vmatpush1.msra.mxu0 0.0
    %776 = vmatprep.subr.mxu0 0.0
    %777 = vmatpush1.msra.mxu0 0.0
    %778 = vmatprep.subr.mxu0 0.0
    %779 = vmatpush1.msra.mxu0 0.0
    %780 = vmatprep.subr.mxu0 0.0
    %781 = vmatpush1.msra.mxu0 0.0
    %782 = vmatprep.subr.mxu0 0.0
    %783 = vmatpush1.msra.mxu0 0.0
    %784 = vmatprep.subr.mxu0 0.0
    %785 = vmatpush1.msra.mxu0 0.0
    %786 = vmatprep.subr.mxu0 0.0
    %787 = vmatpush1.msra.mxu0 0.0
    %788 = vmatprep.subr.mxu0 0.0
    %789 = vmatpush1.msra.mxu0 0.0
    %790 = vmatprep.subr.mxu0 0.0
    %791 = vmatpush1.msra.mxu0 0.0
    %792 = vmatprep.subr.mxu0 0.0
    %793 = vmatpush1.msra.mxu0 0.0
    %794 = vmatprep.subr.mxu0 0.0
    %795 = vmatpush1.msra.mxu0 0.0
    %796 = vmatprep.subr.mxu0 0.0
    %797 = vmatpush1.msra.mxu0 0.0
    %798 = vmatprep.subr.mxu0 0.0
    %799 = vmatpush1.msra.mxu0 0.0
    %800 = vmatprep.subr.mxu0 0.0
    %801 = vmatpush1.msra.mxu0 0.0
    %802 = vmatprep.subr.mxu0 0.0
    %803 = vmatpush1.msra.mxu0 0.0
    %804 = vmatprep.subr.mxu0 0.0
    %805 = vmatpush1.msra.mxu0 0.0
    %806 = vmatprep.subr.mxu0 0.0
    %807 = vmatpush1.msra.mxu0 0.0
    %808 = vmatprep.subr.mxu0 0.0
    %809 = vmatpush1.msra.mxu0 0.0
    %810 = vmatprep.subr.mxu0 0.0
    %811 = vmatpush1.msra.mxu0 0.0
    %812 = vmatprep.subr.mxu0 0.0
    %813 = vmatpush1.msra.mxu0 0.0
    %814 = vmatprep.subr.mxu0 0.0
    %815 = vmatpush1.msra.mxu0 0.0
    %816 = vmatprep.subr.mxu0 0.0
    %817 = vmatpush1.msra.mxu0 0.0
    %818 = vmatprep.subr.mxu0 0.0
    %819 = vmatpush1.msra.mxu0 0.0
    %820 = vmatprep.subr.mxu0 0.0
    %821 = vmatpush1.msra.mxu0 0.0
    %822 = vmatprep.subr.mxu0 0.0
    %823 = vmatpush1.msra.mxu0 0.0
    %824 = vmatprep.subr.mxu0 0.0
    %825 = vmatpush1.msra.mxu0 0.0
    %826 = vmatprep.subr.mxu0 0.0
    %827 = vmatpush1.msra.mxu0 0.0
    %828 = vmatprep.subr.mxu0 0.0
    %829 = vmatpush1.msra.mxu0 0.0
    %830 = vmatprep.subr.mxu0 0.0
    %831 = vmatpush1.msra.mxu0 0.0
    %832 = vmatprep.subr.mxu0 0.0
    %833 = vmatpush1.msra.mxu0 0.0
    %834 = vmatprep.mubr.f32.mxu0 0.0
    %835 = vmatmul.mubr.f32.gmra.mrb[0].mxu0 %v765
    %v836 = vpop.f32.mrb[0].mxu0
    %v837 = vadd.f32 0.0, %v836
    %v838 = vpop.f32.mrb[0].mxu0
    %839 = vmatprep.mubr.f32.mxu0 0.0
    %840 = vmatmul.mubr.f32.gmra.mrb[0].mxu0 %v768
    %v841 = vpop.f32.mrb[0].mxu0
    %v842 = vadd.f32 0.0, %v841
    %v843 = vpop.f32.mrb[0].mxu0
    %844 = vdwg.mxu0
    %v845 = vlaneseq
    %v846 = vshrl.u32 %v845, 7
    %v847 = vsub.s32 3, %v846
    %v848 = vrot.slane %v98, %v847
    %850 = vrot.lane.b32.xlu0 %v848, 24
    %v851 = vpop.permute.xlu0 %850
    %v853 = vmul.f32 %v174, %v851
    %v854 = vmul.f32 %v179, %v851
    %857 = vrot.lane.b32.xlu0 %v853, 104
    %v858 = vpop.permute.xlu0 %857
    %859 = vrot.lane.b32.xlu0 %v854, 104
    %v860 = vpop.permute.xlu0 %859
    %v863 = vsel %vm100, %v858, 0.0
    %864 = vadd.xlane.f32.xlu0 %v863
    %v865 = vpop.xlane.xlu0 %864
    %v866 = vsel %vm100, %v860, 0.0
    %867 = vadd.xlane.f32.xlu0 %v866
    %v868 = vpop.xlane.xlu0 %867
    %v869 = vrot.slane %v97, 3
    %870 = vrot.lane.b32.xlu0 %v174, 104
    %v871 = vpop.permute.xlu0 %870
    %872 = vrot.lane.b32.xlu0 %v179, 104
    %v873 = vpop.permute.xlu0 %872
    %v874 = vsel %vm100, %v869, 0
    %v876 = vsel %vm100, %v871, 0
    %v878 = vsel %vm100, %v873, 0
    %880 = vmatprep.subr.mxu0 0.0
    %881 = vmatpush1.xpose.msra.mxu0 %v876
    %882 = vmatprep.subr.mxu0 0.0
    %883 = vmatpush1.xpose.msra.mxu0 %v878
    %884 = vmatprep.subr.mxu0 0.0
    %885 = vmatpush1.xpose.msra.mxu0 0.0
    %886 = vmatprep.subr.mxu0 0.0
    %887 = vmatpush1.xpose.msra.mxu0 0.0
    %888 = vmatprep.subr.mxu0 0.0
    %889 = vmatpush1.xpose.msra.mxu0 0.0
    %890 = vmatprep.subr.mxu0 0.0
    %891 = vmatpush1.xpose.msra.mxu0 0.0
    %892 = vmatprep.subr.mxu0 0.0
    %893 = vmatpush1.xpose.msra.mxu0 0.0
    %894 = vmatprep.subr.mxu0 0.0
    %895 = vmatpush1.xpose.msra.mxu0 0.0
    %896 = vmatprep.subr.mxu0 0.0
    %897 = vmatpush1.xpose.msra.mxu0 0.0
    %898 = vmatprep.subr.mxu0 0.0
    %899 = vmatpush1.xpose.msra.mxu0 0.0
    %900 = vmatprep.subr.mxu0 0.0
    %901 = vmatpush1.xpose.msra.mxu0 0.0
    %902 = vmatprep.subr.mxu0 0.0
    %903 = vmatpush1.xpose.msra.mxu0 0.0
    %904 = vmatprep.subr.mxu0 0.0
    %905 = vmatpush1.xpose.msra.mxu0 0.0
    %906 = vmatprep.subr.mxu0 0.0
    %907 = vmatpush1.xpose.msra.mxu0 0.0
    %908 = vmatprep.subr.mxu0 0.0
    %909 = vmatpush1.xpose.msra.mxu0 0.0
    %910 = vmatprep.subr.mxu0 0.0
    %911 = vmatpush1.xpose.msra.mxu0 0.0
    %912 = vmatprep.subr.mxu0 0.0
    %913 = vmatpush1.xpose.msra.mxu0 0.0
    %914 = vmatprep.subr.mxu0 0.0
    %915 = vmatpush1.xpose.msra.mxu0 0.0
    %916 = vmatprep.subr.mxu0 0.0
    %917 = vmatpush1.xpose.msra.mxu0 0.0
    %918 = vmatprep.subr.mxu0 0.0
    %919 = vmatpush1.xpose.msra.mxu0 0.0
    %920 = vmatprep.subr.mxu0 0.0
    %921 = vmatpush1.xpose.msra.mxu0 0.0
    %922 = vmatprep.subr.mxu0 0.0
    %923 = vmatpush1.xpose.msra.mxu0 0.0
    %924 = vmatprep.subr.mxu0 0.0
    %925 = vmatpush1.xpose.msra.mxu0 0.0
    %926 = vmatprep.subr.mxu0 0.0
    %927 = vmatpush1.xpose.msra.mxu0 0.0
    %928 = vmatprep.subr.mxu0 0.0
    %929 = vmatpush1.xpose.msra.mxu0 0.0
    %930 = vmatprep.subr.mxu0 0.0
    %931 = vmatpush1.xpose.msra.mxu0 0.0
    %932 = vmatprep.subr.mxu0 0.0
    %933 = vmatpush1.xpose.msra.mxu0 0.0
    %934 = vmatprep.subr.mxu0 0.0
    %935 = vmatpush1.xpose.msra.mxu0 0.0
    %936 = vmatprep.subr.mxu0 0.0
    %937 = vmatpush1.xpose.msra.mxu0 0.0
    %938 = vmatprep.subr.mxu0 0.0
    %939 = vmatpush1.xpose.msra.mxu0 0.0
    %940 = vmatprep.subr.mxu0 0.0
    %941 = vmatpush1.xpose.msra.mxu0 0.0
    %942 = vmatprep.subr.mxu0 0.0
    %943 = vmatpush1.xpose.msra.mxu0 0.0
    %944 = vmatprep.mubr.f32.mxu0 0.0
    %945 = vmatmul.mubr.f32.gmra.mrb[0].mxu0 %v874
    %v946 = vpop.f32.mrb[0].mxu0
    %v947 = vadd.f32 0.0, %v946
    %v948 = vpop.f32.mrb[0].mxu0
    %949 = vdwg.mxu0
    %v950 = vlaneseq
    %v951 = vshrl.u32 %v950, 7
    %v952 = vsub.s32 0, %v951
    %v953 = vrot.slane %v947, %v952
    %v954 = vadd.f32 %v865, %v953
    %v955 = vadd.f32 %v868, %v953
    %vm956 = vcmp.ge.f32.partialorder %v954, 0.0
    %vm957 = vcmp.ge.f32.partialorder %v955, 0.0
    %v958 = vmul.f32 %v954, 0.2
    %v959 = vmul.f32 %v955, 0.2
    %v960 = vsel %vm956, %v954, %v958
    %v961 = vsel %vm957, %v955, %v959
    %v962 = vadd.f32 %v960, %v92
    %v963 = vadd.f32 %v961, %v93
    %v964 = vsel %vm287, %v962, -inf
    %965 = vmax.xlane.f32.xlu0 %v964
    %v966 = vpop.xlane.xlu0 %965
    %v967 = vsel %vm287, %v963, -inf
    %968 = vmax.xlane.f32.xlu0 %v967
    %v969 = vpop.xlane.xlu0 %968
    %v970 = vsub.f32 %v962, %v966
    %v971 = vsub.f32 %v963, %v969
    %v972 = vmul.f32 %v970, 1.442695
    %v973 = vpow.pop %v972
    %v974 = vmul.f32 %v971, 1.442695
    %v975 = vpow.pop %v974
    %v976 = vsel %vm287, %v973, 0.0
    %977 = vadd.xlane.f32.xlu0 %v976
    %v978 = vpop.xlane.xlu0 %977
    %v979 = vsel %vm287, %v975, 0.0
    %980 = vadd.xlane.f32.xlu0 %v979
    %v981 = vpop.xlane.xlu0 %980
    %v982 = vmax.f32 %v978, 1e-30
    %v983 = vmax.f32 %v981, 1e-30
    %v984 = vrcp.pop %v982
    %v985 = vmul.f32 %v973, %v984
    %v986 = vrcp.pop %v983
    %v987 = vmul.f32 %v975, %v986
    %v991 = vsel %vm287, %v985, 0
    %v994 = vsel %vm287, %v987, 0
    %996 = vmatprep.subr.mxu0 0.0
    %997 = vmatpush1.msra.mxu0 %v871
    %998 = vmatprep.subr.mxu0 0.0
    %999 = vmatpush1.msra.mxu0 %v873
    %1000 = vmatprep.subr.mxu0 0.0
    %1001 = vmatpush1.msra.mxu0 0.0
    %1002 = vmatprep.subr.mxu0 0.0
    %1003 = vmatpush1.msra.mxu0 0.0
    %1004 = vmatprep.subr.mxu0 0.0
    %1005 = vmatpush1.msra.mxu0 0.0
    %1006 = vmatprep.subr.mxu0 0.0
    %1007 = vmatpush1.msra.mxu0 0.0
    %1008 = vmatprep.subr.mxu0 0.0
    %1009 = vmatpush1.msra.mxu0 0.0
    %1010 = vmatprep.subr.mxu0 0.0
    %1011 = vmatpush1.msra.mxu0 0.0
    %1012 = vmatprep.subr.mxu0 0.0
    %1013 = vmatpush1.msra.mxu0 0.0
    %1014 = vmatprep.subr.mxu0 0.0
    %1015 = vmatpush1.msra.mxu0 0.0
    %1016 = vmatprep.subr.mxu0 0.0
    %1017 = vmatpush1.msra.mxu0 0.0
    %1018 = vmatprep.subr.mxu0 0.0
    %1019 = vmatpush1.msra.mxu0 0.0
    %1020 = vmatprep.subr.mxu0 0.0
    %1021 = vmatpush1.msra.mxu0 0.0
    %1022 = vmatprep.subr.mxu0 0.0
    %1023 = vmatpush1.msra.mxu0 0.0
    %1024 = vmatprep.subr.mxu0 0.0
    %1025 = vmatpush1.msra.mxu0 0.0
    %1026 = vmatprep.subr.mxu0 0.0
    %1027 = vmatpush1.msra.mxu0 0.0
    %1028 = vmatprep.subr.mxu0 0.0
    %1029 = vmatpush1.msra.mxu0 0.0
    %1030 = vmatprep.subr.mxu0 0.0
    %1031 = vmatpush1.msra.mxu0 0.0
    %1032 = vmatprep.subr.mxu0 0.0
    %1033 = vmatpush1.msra.mxu0 0.0
    %1034 = vmatprep.subr.mxu0 0.0
    %1035 = vmatpush1.msra.mxu0 0.0
    %1036 = vmatprep.subr.mxu0 0.0
    %1037 = vmatpush1.msra.mxu0 0.0
    %1038 = vmatprep.subr.mxu0 0.0
    %1039 = vmatpush1.msra.mxu0 0.0
    %1040 = vmatprep.subr.mxu0 0.0
    %1041 = vmatpush1.msra.mxu0 0.0
    %1042 = vmatprep.subr.mxu0 0.0
    %1043 = vmatpush1.msra.mxu0 0.0
    %1044 = vmatprep.subr.mxu0 0.0
    %1045 = vmatpush1.msra.mxu0 0.0
    %1046 = vmatprep.subr.mxu0 0.0
    %1047 = vmatpush1.msra.mxu0 0.0
    %1048 = vmatprep.subr.mxu0 0.0
    %1049 = vmatpush1.msra.mxu0 0.0
    %1050 = vmatprep.subr.mxu0 0.0
    %1051 = vmatpush1.msra.mxu0 0.0
    %1052 = vmatprep.subr.mxu0 0.0
    %1053 = vmatpush1.msra.mxu0 0.0
    %1054 = vmatprep.subr.mxu0 0.0
    %1055 = vmatpush1.msra.mxu0 0.0
    %1056 = vmatprep.subr.mxu0 0.0
    %1057 = vmatpush1.msra.mxu0 0.0
    %1058 = vmatprep.subr.mxu0 0.0
    %1059 = vmatpush1.msra.mxu0 0.0
    %1060 = vmatprep.mubr.f32.mxu0 0.0
    %1061 = vmatmul.mubr.f32.gmra.mrb[0].mxu0 %v991
    %v1062 = vpop.f32.mrb[0].mxu0
    %v1063 = vadd.f32 0.0, %v1062
    %v1064 = vpop.f32.mrb[0].mxu0
    %1065 = vmatprep.mubr.f32.mxu0 0.0
    %1066 = vmatmul.mubr.f32.gmra.mrb[0].mxu0 %v994
    %v1067 = vpop.f32.mrb[0].mxu0
    %v1068 = vadd.f32 0.0, %v1067
    %v1069 = vpop.f32.mrb[0].mxu0
    %1070 = vdwg.mxu0
    %1073 = vrot.lane.b32.xlu0 %v611, 8
    %v1074 = vpop.permute.xlu0 %1073
    %1075 = vrot.lane.b32.xlu0 %v616, 8
    %v1076 = vpop.permute.xlu0 %1075
    %1081 = vrot.lane.b32.xlu0 %v837, 16
    %v1082 = vpop.permute.xlu0 %1081
    %1083 = vrot.lane.b32.xlu0 %v842, 16
    %v1084 = vpop.permute.xlu0 %1083
    %1089 = vrot.lane.b32.xlu0 %v1063, 24
    %v1090 = vpop.permute.xlu0 %1089
    %1091 = vrot.lane.b32.xlu0 %v1068, 24
    %v1092 = vpop.permute.xlu0 %1091
    %v1095 = vsel %vm100, %v385, %v1074
    %v1096 = vsel %vm100, %v390, %v1076
    %v1097 = vsel %vm287, %v1095, %v1082
    %v1098 = vsel %vm287, %v1096, %v1084
    %vm1099 = vcmask 195584
    %v1100 = vsel %vm1099, %v1097, %v1090
    %v1101 = vsel %vm1099, %v1098, %v1092
    %v1103 = vlaneseq
    %v1104 = vshrl.u32 %v1103, 7
    %v1105 = vsub.s32 0, %v1104
    %v1106 = vrot.slane %v99, %v1105
    %v1108 = vadd.f32 %v1100, %v1106
    %v1109 = vadd.f32 %v1101, %v1106
    %vm1110 = vcmp.ge.f32.partialorder %v1108, 0.0
    %vm1111 = vcmp.ge.f32.partialorder %v1109, 0.0
    %v1112 = vmul.f32 %v1108, 0.2
    %v1113 = vmul.f32 %v1109, 0.2
    %v1114 = vsel %vm1110, %v1108, %v1112
    %v1115 = vsel %vm1111, %v1109, %v1113
    %v1116 = vld [vmem:[%s6] sm:$0xff]
    %v1117 = vld [vmem:[%s6 + $0x8] sm:$0xff]
    %v1118 = vld [vmem:[%s6 + $0x10] sm:$0xff]
    %v1119 = vld [vmem:[%s6 + $0x18] sm:$0xff]
    %v1120 = vld [vmem:[%s7] sm:$0xf]
    %v1121 = vld [vmem:[%s8] sm:$0xf]
    %v1122 = vld [vmem:[%s9] sm:$0x1]
    %vm1123 = vcmask 261120
    %v1125 = vsel %vm1123, %v1114, 0
    %v1128 = vsel %vm1123, %v1115, 0
    %1130 = vmatprep.subr.mxu0 0.0
    %1131 = vmatpush1.msra.mxu0 %v1116
    %1132 = vmatprep.subr.mxu0 0.0
    %1133 = vmatpush1.msra.mxu0 %v1117
    %1134 = vmatprep.subr.mxu0 0.0
    %1135 = vmatpush1.msra.mxu0 %v1118
    %1136 = vmatprep.subr.mxu0 0.0
    %1137 = vmatpush1.msra.mxu0 %v1119
    %1138 = vmatprep.subr.mxu0 0.0
    %1139 = vmatpush1.msra.mxu0 0.0
    %1140 = vmatprep.subr.mxu0 0.0
    %1141 = vmatpush1.msra.mxu0 0.0
    %1142 = vmatprep.subr.mxu0 0.0
    %1143 = vmatpush1.msra.mxu0 0.0
    %1144 = vmatprep.subr.mxu0 0.0
    %1145 = vmatpush1.msra.mxu0 0.0
    %1146 = vmatprep.subr.mxu0 0.0
    %1147 = vmatpush1.msra.mxu0 0.0
    %1148 = vmatprep.subr.mxu0 0.0
    %1149 = vmatpush1.msra.mxu0 0.0
    %1150 = vmatprep.subr.mxu0 0.0
    %1151 = vmatpush1.msra.mxu0 0.0
    %1152 = vmatprep.subr.mxu0 0.0
    %1153 = vmatpush1.msra.mxu0 0.0
    %1154 = vmatprep.subr.mxu0 0.0
    %1155 = vmatpush1.msra.mxu0 0.0
    %1156 = vmatprep.subr.mxu0 0.0
    %1157 = vmatpush1.msra.mxu0 0.0
    %1158 = vmatprep.subr.mxu0 0.0
    %1159 = vmatpush1.msra.mxu0 0.0
    %1160 = vmatprep.subr.mxu0 0.0
    %1161 = vmatpush1.msra.mxu0 0.0
    %1162 = vmatprep.subr.mxu0 0.0
    %1163 = vmatpush1.msra.mxu0 0.0
    %1164 = vmatprep.subr.mxu0 0.0
    %1165 = vmatpush1.msra.mxu0 0.0
    %1166 = vmatprep.subr.mxu0 0.0
    %1167 = vmatpush1.msra.mxu0 0.0
    %1168 = vmatprep.subr.mxu0 0.0
    %1169 = vmatpush1.msra.mxu0 0.0
    %1170 = vmatprep.subr.mxu0 0.0
    %1171 = vmatpush1.msra.mxu0 0.0
    %1172 = vmatprep.subr.mxu0 0.0
    %1173 = vmatpush1.msra.mxu0 0.0
    %1174 = vmatprep.subr.mxu0 0.0
    %1175 = vmatpush1.msra.mxu0 0.0
    %1176 = vmatprep.subr.mxu0 0.0
    %1177 = vmatpush1.msra.mxu0 0.0
    %1178 = vmatprep.subr.mxu0 0.0
    %1179 = vmatpush1.msra.mxu0 0.0
    %1180 = vmatprep.subr.mxu0 0.0
    %1181 = vmatpush1.msra.mxu0 0.0
    %1182 = vmatprep.subr.mxu0 0.0
    %1183 = vmatpush1.msra.mxu0 0.0
    %1184 = vmatprep.subr.mxu0 0.0
    %1185 = vmatpush1.msra.mxu0 0.0
    %1186 = vmatprep.subr.mxu0 0.0
    %1187 = vmatpush1.msra.mxu0 0.0
    %1188 = vmatprep.subr.mxu0 0.0
    %1189 = vmatpush1.msra.mxu0 0.0
    %1190 = vmatprep.subr.mxu0 0.0
    %1191 = vmatpush1.msra.mxu0 0.0
    %1192 = vmatprep.subr.mxu0 0.0
    %1193 = vmatpush1.msra.mxu0 0.0
    %1194 = vmatprep.mubr.f32.mxu0 0.0
    %1195 = vmatmul.mubr.f32.gmra.mrb[0].mxu0 %v1125
    %v1196 = vpop.f32.mrb[0].mxu0
    %v1197 = vadd.f32 0.0, %v1196
    %v1198 = vpop.f32.mrb[0].mxu0
    %1199 = vmatprep.mubr.f32.mxu0 0.0
    %1200 = vmatmul.mubr.f32.gmra.mrb[0].mxu0 %v1128
    %v1201 = vpop.f32.mrb[0].mxu0
    %v1202 = vadd.f32 0.0, %v1201
    %v1203 = vpop.f32.mrb[0].mxu0
    %1204 = vdwg.mxu0
    %v1205 = vlaneseq
    %v1206 = vshrl.u32 %v1205, 7
    %v1207 = vsub.s32 0, %v1206
    %v1208 = vrot.slane %v1121, %v1207
    %v1209 = vmul.f32 %v1197, %v1208
    %v1210 = vmul.f32 %v1202, %v1208
    %v1211 = vsel %vm100, %v1209, 0.0
    %1212 = vadd.xlane.f32.xlu0 %v1211
    %v1213 = vpop.xlane.xlu0 %1212
    %v1214 = vsel %vm100, %v1210, 0.0
    %1215 = vadd.xlane.f32.xlu0 %v1214
    %v1216 = vpop.xlane.xlu0 %1215
    %v1218 = vsel %vm100, %v1120, 0
    %v1221 = vsel %vm100, %v1197, 0
    %v1224 = vsel %vm100, %v1202, 0
    %1226 = vmatprep.subr.mxu0 0.0
    %1227 = vmatpush1.xpose.msra.mxu0 %v1221
    %1228 = vmatprep.subr.mxu0 0.0
    %1229 = vmatpush1.xpose.msra.mxu0 %v1224
    %1230 = vmatprep.subr.mxu0 0.0
    %1231 = vmatpush1.xpose.msra.mxu0 0.0
    %1232 = vmatprep.subr.mxu0 0.0
    %1233 = vmatpush1.xpose.msra.mxu0 0.0
    %1234 = vmatprep.subr.mxu0 0.0
    %1235 = vmatpush1.xpose.msra.mxu0 0.0
    %1236 = vmatprep.subr.mxu0 0.0
    %1237 = vmatpush1.xpose.msra.mxu0 0.0
    %1238 = vmatprep.subr.mxu0 0.0
    %1239 = vmatpush1.xpose.msra.mxu0 0.0
    %1240 = vmatprep.subr.mxu0 0.0
    %1241 = vmatpush1.xpose.msra.mxu0 0.0
    %1242 = vmatprep.subr.mxu0 0.0
    %1243 = vmatpush1.xpose.msra.mxu0 0.0
    %1244 = vmatprep.subr.mxu0 0.0
    %1245 = vmatpush1.xpose.msra.mxu0 0.0
    %1246 = vmatprep.subr.mxu0 0.0
    %1247 = vmatpush1.xpose.msra.mxu0 0.0
    %1248 = vmatprep.subr.mxu0 0.0
    %1249 = vmatpush1.xpose.msra.mxu0 0.0
    %1250 = vmatprep.subr.mxu0 0.0
    %1251 = vmatpush1.xpose.msra.mxu0 0.0
    %1252 = vmatprep.subr.mxu0 0.0
    %1253 = vmatpush1.xpose.msra.mxu0 0.0
    %1254 = vmatprep.subr.mxu0 0.0
    %1255 = vmatpush1.xpose.msra.mxu0 0.0
    %1256 = vmatprep.subr.mxu0 0.0
    %1257 = vmatpush1.xpose.msra.mxu0 0.0
    %1258 = vmatprep.subr.mxu0 0.0
    %1259 = vmatpush1.xpose.msra.mxu0 0.0
    %1260 = vmatprep.subr.mxu0 0.0
    %1261 = vmatpush1.xpose.msra.mxu0 0.0
    %1262 = vmatprep.subr.mxu0 0.0
    %1263 = vmatpush1.xpose.msra.mxu0 0.0
    %1264 = vmatprep.subr.mxu0 0.0
    %1265 = vmatpush1.xpose.msra.mxu0 0.0
    %1266 = vmatprep.subr.mxu0 0.0
    %1267 = vmatpush1.xpose.msra.mxu0 0.0
    %1268 = vmatprep.subr.mxu0 0.0
    %1269 = vmatpush1.xpose.msra.mxu0 0.0
    %1270 = vmatprep.subr.mxu0 0.0
    %1271 = vmatpush1.xpose.msra.mxu0 0.0
    %1272 = vmatprep.subr.mxu0 0.0
    %1273 = vmatpush1.xpose.msra.mxu0 0.0
    %1274 = vmatprep.subr.mxu0 0.0
    %1275 = vmatpush1.xpose.msra.mxu0 0.0
    %1276 = vmatprep.subr.mxu0 0.0
    %1277 = vmatpush1.xpose.msra.mxu0 0.0
    %1278 = vmatprep.subr.mxu0 0.0
    %1279 = vmatpush1.xpose.msra.mxu0 0.0
    %1280 = vmatprep.subr.mxu0 0.0
    %1281 = vmatpush1.xpose.msra.mxu0 0.0
    %1282 = vmatprep.subr.mxu0 0.0
    %1283 = vmatpush1.xpose.msra.mxu0 0.0
    %1284 = vmatprep.subr.mxu0 0.0
    %1285 = vmatpush1.xpose.msra.mxu0 0.0
    %1286 = vmatprep.subr.mxu0 0.0
    %1287 = vmatpush1.xpose.msra.mxu0 0.0
    %1288 = vmatprep.subr.mxu0 0.0
    %1289 = vmatpush1.xpose.msra.mxu0 0.0
    %1290 = vmatprep.mubr.f32.mxu0 0.0
    %1291 = vmatmul.mubr.f32.gmra.mrb[0].mxu0 %v1218
    %v1292 = vpop.f32.mrb[0].mxu0
    %v1293 = vadd.f32 0.0, %v1292
    %v1294 = vpop.f32.mrb[0].mxu0
    %1295 = vdwg.mxu0
    %v1296 = vlaneseq
    %v1297 = vshrl.u32 %v1296, 7
    %v1298 = vsub.s32 0, %v1297
    %v1299 = vrot.slane %v1293, %v1298
    %v1300 = vadd.f32 %v1213, %v1299
    %v1301 = vadd.f32 %v1216, %v1299
    %vm1302 = vcmp.ge.f32.partialorder %v1300, 0.0
    %vm1303 = vcmp.ge.f32.partialorder %v1301, 0.0
    %v1304 = vmul.f32 %v1300, 0.2
    %v1305 = vmul.f32 %v1301, 0.2
    %v1306 = vsel %vm1302, %v1300, %v1304
    %v1307 = vsel %vm1303, %v1301, %v1305
    %v1308 = vadd.f32 %v1306, %v92
    %v1309 = vadd.f32 %v1307, %v93
    %v1310 = vsel %vm287, %v1308, -inf
    %1311 = vmax.xlane.f32.xlu0 %v1310
    %v1312 = vpop.xlane.xlu0 %1311
    %v1313 = vsel %vm287, %v1309, -inf
    %1314 = vmax.xlane.f32.xlu0 %v1313
    %v1315 = vpop.xlane.xlu0 %1314
    %v1316 = vsub.f32 %v1308, %v1312
    %v1317 = vsub.f32 %v1309, %v1315
    %v1318 = vmul.f32 %v1316, 1.442695
    %v1319 = vpow.pop %v1318
    %v1320 = vmul.f32 %v1317, 1.442695
    %v1321 = vpow.pop %v1320
    %v1322 = vsel %vm287, %v1319, 0.0
    %1323 = vadd.xlane.f32.xlu0 %v1322
    %v1324 = vpop.xlane.xlu0 %1323
    %v1325 = vsel %vm287, %v1321, 0.0
    %1326 = vadd.xlane.f32.xlu0 %v1325
    %v1327 = vpop.xlane.xlu0 %1326
    %v1328 = vmax.f32 %v1324, 1e-30
    %v1329 = vmax.f32 %v1327, 1e-30
    %v1330 = vrcp.pop %v1328
    %v1331 = vmul.f32 %v1319, %v1330
    %v1332 = vrcp.pop %v1329
    %v1333 = vmul.f32 %v1321, %v1332
    %v1335 = vsel %vm287, %v1331, 0
    %v1338 = vsel %vm287, %v1333, 0
    %1340 = vmatprep.subr.mxu0 0.0
    %1341 = vmatpush1.msra.mxu0 %v1197
    %1342 = vmatprep.subr.mxu0 0.0
    %1343 = vmatpush1.msra.mxu0 %v1202
    %1344 = vmatprep.subr.mxu0 0.0
    %1345 = vmatpush1.msra.mxu0 0.0
    %1346 = vmatprep.subr.mxu0 0.0
    %1347 = vmatpush1.msra.mxu0 0.0
    %1348 = vmatprep.subr.mxu0 0.0
    %1349 = vmatpush1.msra.mxu0 0.0
    %1350 = vmatprep.subr.mxu0 0.0
    %1351 = vmatpush1.msra.mxu0 0.0
    %1352 = vmatprep.subr.mxu0 0.0
    %1353 = vmatpush1.msra.mxu0 0.0
    %1354 = vmatprep.subr.mxu0 0.0
    %1355 = vmatpush1.msra.mxu0 0.0
    %1356 = vmatprep.subr.mxu0 0.0
    %1357 = vmatpush1.msra.mxu0 0.0
    %1358 = vmatprep.subr.mxu0 0.0
    %1359 = vmatpush1.msra.mxu0 0.0
    %1360 = vmatprep.subr.mxu0 0.0
    %1361 = vmatpush1.msra.mxu0 0.0
    %1362 = vmatprep.subr.mxu0 0.0
    %1363 = vmatpush1.msra.mxu0 0.0
    %1364 = vmatprep.subr.mxu0 0.0
    %1365 = vmatpush1.msra.mxu0 0.0
    %1366 = vmatprep.subr.mxu0 0.0
    %1367 = vmatpush1.msra.mxu0 0.0
    %1368 = vmatprep.subr.mxu0 0.0
    %1369 = vmatpush1.msra.mxu0 0.0
    %1370 = vmatprep.subr.mxu0 0.0
    %1371 = vmatpush1.msra.mxu0 0.0
    %1372 = vmatprep.subr.mxu0 0.0
    %1373 = vmatpush1.msra.mxu0 0.0
    %1374 = vmatprep.subr.mxu0 0.0
    %1375 = vmatpush1.msra.mxu0 0.0
    %1376 = vmatprep.subr.mxu0 0.0
    %1377 = vmatpush1.msra.mxu0 0.0
    %1378 = vmatprep.subr.mxu0 0.0
    %1379 = vmatpush1.msra.mxu0 0.0
    %1380 = vmatprep.subr.mxu0 0.0
    %1381 = vmatpush1.msra.mxu0 0.0
    %1382 = vmatprep.subr.mxu0 0.0
    %1383 = vmatpush1.msra.mxu0 0.0
    %1384 = vmatprep.subr.mxu0 0.0
    %1385 = vmatpush1.msra.mxu0 0.0
    %1386 = vmatprep.subr.mxu0 0.0
    %1387 = vmatpush1.msra.mxu0 0.0
    %1388 = vmatprep.subr.mxu0 0.0
    %1389 = vmatpush1.msra.mxu0 0.0
    %1390 = vmatprep.subr.mxu0 0.0
    %1391 = vmatpush1.msra.mxu0 0.0
    %1392 = vmatprep.subr.mxu0 0.0
    %1393 = vmatpush1.msra.mxu0 0.0
    %1394 = vmatprep.subr.mxu0 0.0
    %1395 = vmatpush1.msra.mxu0 0.0
    %1396 = vmatprep.subr.mxu0 0.0
    %1397 = vmatpush1.msra.mxu0 0.0
    %1398 = vmatprep.subr.mxu0 0.0
    %1399 = vmatpush1.msra.mxu0 0.0
    %1400 = vmatprep.subr.mxu0 0.0
    %1401 = vmatpush1.msra.mxu0 0.0
    %1402 = vmatprep.subr.mxu0 0.0
    %1403 = vmatpush1.msra.mxu0 0.0
    %1404 = vmatprep.mubr.f32.mxu0 0.0
    %1405 = vmatmul.mubr.f32.gmra.mrb[0].mxu0 %v1335
    %v1406 = vpop.f32.mrb[0].mxu0
    %v1407 = vadd.f32 0.0, %v1406
    %v1408 = vpop.f32.mrb[0].mxu0
    %1409 = vmatprep.mubr.f32.mxu0 0.0
    %1410 = vmatmul.mubr.f32.gmra.mrb[0].mxu0 %v1338
    %v1411 = vpop.f32.mrb[0].mxu0
    %v1412 = vadd.f32 0.0, %v1411
    %v1413 = vpop.f32.mrb[0].mxu0
    %1414 = vdwg.mxu0
    %v1415 = vlaneseq
    %v1416 = vshrl.u32 %v1415, 7
    %v1417 = vsub.s32 1, %v1416
    %v1418 = vrot.slane %v1121, %v1417
    %1420 = vrot.lane.b32.xlu0 %v1418, 8
    %v1421 = vpop.permute.xlu0 %1420
    %v1423 = vmul.f32 %v1197, %v1421
    %v1424 = vmul.f32 %v1202, %v1421
    %1427 = vrot.lane.b32.xlu0 %v1423, 120
    %v1428 = vpop.permute.xlu0 %1427
    %1429 = vrot.lane.b32.xlu0 %v1424, 120
    %v1430 = vpop.permute.xlu0 %1429
    %v1433 = vsel %vm100, %v1428, 0.0
    %1434 = vadd.xlane.f32.xlu0 %v1433
    %v1435 = vpop.xlane.xlu0 %1434
    %v1436 = vsel %vm100, %v1430, 0.0
    %1437 = vadd.xlane.f32.xlu0 %v1436
    %v1438 = vpop.xlane.xlu0 %1437
    %v1439 = vrot.slane %v1120, 1
    %1440 = vrot.lane.b32.xlu0 %v1197, 120
    %v1441 = vpop.permute.xlu0 %1440
    %1442 = vrot.lane.b32.xlu0 %v1202, 120
    %v1443 = vpop.permute.xlu0 %1442
    %v1444 = vsel %vm100, %v1439, 0
    %v1446 = vsel %vm100, %v1441, 0
    %v1448 = vsel %vm100, %v1443, 0
    %1450 = vmatprep.subr.mxu0 0.0
    %1451 = vmatpush1.xpose.msra.mxu0 %v1446
    %1452 = vmatprep.subr.mxu0 0.0
    %1453 = vmatpush1.xpose.msra.mxu0 %v1448
    %1454 = vmatprep.subr.mxu0 0.0
    %1455 = vmatpush1.xpose.msra.mxu0 0.0
    %1456 = vmatprep.subr.mxu0 0.0
    %1457 = vmatpush1.xpose.msra.mxu0 0.0
    %1458 = vmatprep.subr.mxu0 0.0
    %1459 = vmatpush1.xpose.msra.mxu0 0.0
    %1460 = vmatprep.subr.mxu0 0.0
    %1461 = vmatpush1.xpose.msra.mxu0 0.0
    %1462 = vmatprep.subr.mxu0 0.0
    %1463 = vmatpush1.xpose.msra.mxu0 0.0
    %1464 = vmatprep.subr.mxu0 0.0
    %1465 = vmatpush1.xpose.msra.mxu0 0.0
    %1466 = vmatprep.subr.mxu0 0.0
    %1467 = vmatpush1.xpose.msra.mxu0 0.0
    %1468 = vmatprep.subr.mxu0 0.0
    %1469 = vmatpush1.xpose.msra.mxu0 0.0
    %1470 = vmatprep.subr.mxu0 0.0
    %1471 = vmatpush1.xpose.msra.mxu0 0.0
    %1472 = vmatprep.subr.mxu0 0.0
    %1473 = vmatpush1.xpose.msra.mxu0 0.0
    %1474 = vmatprep.subr.mxu0 0.0
    %1475 = vmatpush1.xpose.msra.mxu0 0.0
    %1476 = vmatprep.subr.mxu0 0.0
    %1477 = vmatpush1.xpose.msra.mxu0 0.0
    %1478 = vmatprep.subr.mxu0 0.0
    %1479 = vmatpush1.xpose.msra.mxu0 0.0
    %1480 = vmatprep.subr.mxu0 0.0
    %1481 = vmatpush1.xpose.msra.mxu0 0.0
    %1482 = vmatprep.subr.mxu0 0.0
    %1483 = vmatpush1.xpose.msra.mxu0 0.0
    %1484 = vmatprep.subr.mxu0 0.0
    %1485 = vmatpush1.xpose.msra.mxu0 0.0
    %1486 = vmatprep.subr.mxu0 0.0
    %1487 = vmatpush1.xpose.msra.mxu0 0.0
    %1488 = vmatprep.subr.mxu0 0.0
    %1489 = vmatpush1.xpose.msra.mxu0 0.0
    %1490 = vmatprep.subr.mxu0 0.0
    %1491 = vmatpush1.xpose.msra.mxu0 0.0
    %1492 = vmatprep.subr.mxu0 0.0
    %1493 = vmatpush1.xpose.msra.mxu0 0.0
    %1494 = vmatprep.subr.mxu0 0.0
    %1495 = vmatpush1.xpose.msra.mxu0 0.0
    %1496 = vmatprep.subr.mxu0 0.0
    %1497 = vmatpush1.xpose.msra.mxu0 0.0
    %1498 = vmatprep.subr.mxu0 0.0
    %1499 = vmatpush1.xpose.msra.mxu0 0.0
    %1500 = vmatprep.subr.mxu0 0.0
    %1501 = vmatpush1.xpose.msra.mxu0 0.0
    %1502 = vmatprep.subr.mxu0 0.0
    %1503 = vmatpush1.xpose.msra.mxu0 0.0
    %1504 = vmatprep.subr.mxu0 0.0
    %1505 = vmatpush1.xpose.msra.mxu0 0.0
    %1506 = vmatprep.subr.mxu0 0.0
    %1507 = vmatpush1.xpose.msra.mxu0 0.0
    %1508 = vmatprep.subr.mxu0 0.0
    %1509 = vmatpush1.xpose.msra.mxu0 0.0
    %1510 = vmatprep.subr.mxu0 0.0
    %1511 = vmatpush1.xpose.msra.mxu0 0.0
    %1512 = vmatprep.subr.mxu0 0.0
    %1513 = vmatpush1.xpose.msra.mxu0 0.0
    %1514 = vmatprep.mubr.f32.mxu0 0.0
    %1515 = vmatmul.mubr.f32.gmra.mrb[0].mxu0 %v1444
    %v1516 = vpop.f32.mrb[0].mxu0
    %v1517 = vadd.f32 0.0, %v1516
    %v1518 = vpop.f32.mrb[0].mxu0
    %1519 = vdwg.mxu0
    %v1520 = vlaneseq
    %v1521 = vshrl.u32 %v1520, 7
    %v1522 = vsub.s32 0, %v1521
    %v1523 = vrot.slane %v1517, %v1522
    %v1524 = vadd.f32 %v1435, %v1523
    %v1525 = vadd.f32 %v1438, %v1523
    %vm1526 = vcmp.ge.f32.partialorder %v1524, 0.0
    %vm1527 = vcmp.ge.f32.partialorder %v1525, 0.0
    %v1528 = vmul.f32 %v1524, 0.2
    %v1529 = vmul.f32 %v1525, 0.2
    %v1530 = vsel %vm1526, %v1524, %v1528
    %v1531 = vsel %vm1527, %v1525, %v1529
    %v1532 = vadd.f32 %v1530, %v92
    %v1533 = vadd.f32 %v1531, %v93
    %v1534 = vsel %vm287, %v1532, -inf
    %1535 = vmax.xlane.f32.xlu0 %v1534
    %v1536 = vpop.xlane.xlu0 %1535
    %v1537 = vsel %vm287, %v1533, -inf
    %1538 = vmax.xlane.f32.xlu0 %v1537
    %v1539 = vpop.xlane.xlu0 %1538
    %v1540 = vsub.f32 %v1532, %v1536
    %v1541 = vsub.f32 %v1533, %v1539
    %v1542 = vmul.f32 %v1540, 1.442695
    %v1543 = vpow.pop %v1542
    %v1544 = vmul.f32 %v1541, 1.442695
    %v1545 = vpow.pop %v1544
    %v1546 = vsel %vm287, %v1543, 0.0
    %1547 = vadd.xlane.f32.xlu0 %v1546
    %v1548 = vpop.xlane.xlu0 %1547
    %v1549 = vsel %vm287, %v1545, 0.0
    %1550 = vadd.xlane.f32.xlu0 %v1549
    %v1551 = vpop.xlane.xlu0 %1550
    %v1552 = vmax.f32 %v1548, 1e-30
    %v1553 = vmax.f32 %v1551, 1e-30
    %v1554 = vrcp.pop %v1552
    %v1555 = vmul.f32 %v1543, %v1554
    %v1556 = vrcp.pop %v1553
    %v1557 = vmul.f32 %v1545, %v1556
    %v1561 = vsel %vm287, %v1555, 0
    %v1564 = vsel %vm287, %v1557, 0
    %1566 = vmatprep.subr.mxu0 0.0
    %1567 = vmatpush1.msra.mxu0 %v1441
    %1568 = vmatprep.subr.mxu0 0.0
    %1569 = vmatpush1.msra.mxu0 %v1443
    %1570 = vmatprep.subr.mxu0 0.0
    %1571 = vmatpush1.msra.mxu0 0.0
    %1572 = vmatprep.subr.mxu0 0.0
    %1573 = vmatpush1.msra.mxu0 0.0
    %1574 = vmatprep.subr.mxu0 0.0
    %1575 = vmatpush1.msra.mxu0 0.0
    %1576 = vmatprep.subr.mxu0 0.0
    %1577 = vmatpush1.msra.mxu0 0.0
    %1578 = vmatprep.subr.mxu0 0.0
    %1579 = vmatpush1.msra.mxu0 0.0
    %1580 = vmatprep.subr.mxu0 0.0
    %1581 = vmatpush1.msra.mxu0 0.0
    %1582 = vmatprep.subr.mxu0 0.0
    %1583 = vmatpush1.msra.mxu0 0.0
    %1584 = vmatprep.subr.mxu0 0.0
    %1585 = vmatpush1.msra.mxu0 0.0
    %1586 = vmatprep.subr.mxu0 0.0
    %1587 = vmatpush1.msra.mxu0 0.0
    %1588 = vmatprep.subr.mxu0 0.0
    %1589 = vmatpush1.msra.mxu0 0.0
    %1590 = vmatprep.subr.mxu0 0.0
    %1591 = vmatpush1.msra.mxu0 0.0
    %1592 = vmatprep.subr.mxu0 0.0
    %1593 = vmatpush1.msra.mxu0 0.0
    %1594 = vmatprep.subr.mxu0 0.0
    %1595 = vmatpush1.msra.mxu0 0.0
    %1596 = vmatprep.subr.mxu0 0.0
    %1597 = vmatpush1.msra.mxu0 0.0
    %1598 = vmatprep.subr.mxu0 0.0
    %1599 = vmatpush1.msra.mxu0 0.0
    %1600 = vmatprep.subr.mxu0 0.0
    %1601 = vmatpush1.msra.mxu0 0.0
    %1602 = vmatprep.subr.mxu0 0.0
    %1603 = vmatpush1.msra.mxu0 0.0
    %1604 = vmatprep.subr.mxu0 0.0
    %1605 = vmatpush1.msra.mxu0 0.0
    %1606 = vmatprep.subr.mxu0 0.0
    %1607 = vmatpush1.msra.mxu0 0.0
    %1608 = vmatprep.subr.mxu0 0.0
    %1609 = vmatpush1.msra.mxu0 0.0
    %1610 = vmatprep.subr.mxu0 0.0
    %1611 = vmatpush1.msra.mxu0 0.0
    %1612 = vmatprep.subr.mxu0 0.0
    %1613 = vmatpush1.msra.mxu0 0.0
    %1614 = vmatprep.subr.mxu0 0.0
    %1615 = vmatpush1.msra.mxu0 0.0
    %1616 = vmatprep.subr.mxu0 0.0
    %1617 = vmatpush1.msra.mxu0 0.0
    %1618 = vmatprep.subr.mxu0 0.0
    %1619 = vmatpush1.msra.mxu0 0.0
    %1620 = vmatprep.subr.mxu0 0.0
    %1621 = vmatpush1.msra.mxu0 0.0
    %1622 = vmatprep.subr.mxu0 0.0
    %1623 = vmatpush1.msra.mxu0 0.0
    %1624 = vmatprep.subr.mxu0 0.0
    %1625 = vmatpush1.msra.mxu0 0.0
    %1626 = vmatprep.subr.mxu0 0.0
    %1627 = vmatpush1.msra.mxu0 0.0
    %1628 = vmatprep.subr.mxu0 0.0
    %1629 = vmatpush1.msra.mxu0 0.0
    %1630 = vmatprep.mubr.f32.mxu0 0.0
    %1631 = vmatmul.mubr.f32.gmra.mrb[0].mxu0 %v1561
    %v1632 = vpop.f32.mrb[0].mxu0
    %v1633 = vadd.f32 0.0, %v1632
    %v1634 = vpop.f32.mrb[0].mxu0
    %1635 = vmatprep.mubr.f32.mxu0 0.0
    %1636 = vmatmul.mubr.f32.gmra.mrb[0].mxu0 %v1564
    %v1637 = vpop.f32.mrb[0].mxu0
    %v1638 = vadd.f32 0.0, %v1637
    %v1639 = vpop.f32.mrb[0].mxu0
    %1640 = vdwg.mxu0
    %v1641 = vlaneseq
    %v1642 = vshrl.u32 %v1641, 7
    %v1643 = vsub.s32 2, %v1642
    %v1644 = vrot.slane %v1121, %v1643
    %1646 = vrot.lane.b32.xlu0 %v1644, 16
    %v1647 = vpop.permute.xlu0 %1646
    %v1649 = vmul.f32 %v1197, %v1647
    %v1650 = vmul.f32 %v1202, %v1647
    %1653 = vrot.lane.b32.xlu0 %v1649, 112
    %v1654 = vpop.permute.xlu0 %1653
    %1655 = vrot.lane.b32.xlu0 %v1650, 112
    %v1656 = vpop.permute.xlu0 %1655
    %v1659 = vsel %vm100, %v1654, 0.0
    %1660 = vadd.xlane.f32.xlu0 %v1659
    %v1661 = vpop.xlane.xlu0 %1660
    %v1662 = vsel %vm100, %v1656, 0.0
    %1663 = vadd.xlane.f32.xlu0 %v1662
    %v1664 = vpop.xlane.xlu0 %1663
    %v1665 = vrot.slane %v1120, 2
    %1666 = vrot.lane.b32.xlu0 %v1197, 112
    %v1667 = vpop.permute.xlu0 %1666
    %1668 = vrot.lane.b32.xlu0 %v1202, 112
    %v1669 = vpop.permute.xlu0 %1668
    %v1670 = vsel %vm100, %v1665, 0
    %v1672 = vsel %vm100, %v1667, 0
    %v1674 = vsel %vm100, %v1669, 0
    %1676 = vmatprep.subr.mxu0 0.0
    %1677 = vmatpush1.xpose.msra.mxu0 %v1672
    %1678 = vmatprep.subr.mxu0 0.0
    %1679 = vmatpush1.xpose.msra.mxu0 %v1674
    %1680 = vmatprep.subr.mxu0 0.0
    %1681 = vmatpush1.xpose.msra.mxu0 0.0
    %1682 = vmatprep.subr.mxu0 0.0
    %1683 = vmatpush1.xpose.msra.mxu0 0.0
    %1684 = vmatprep.subr.mxu0 0.0
    %1685 = vmatpush1.xpose.msra.mxu0 0.0
    %1686 = vmatprep.subr.mxu0 0.0
    %1687 = vmatpush1.xpose.msra.mxu0 0.0
    %1688 = vmatprep.subr.mxu0 0.0
    %1689 = vmatpush1.xpose.msra.mxu0 0.0
    %1690 = vmatprep.subr.mxu0 0.0
    %1691 = vmatpush1.xpose.msra.mxu0 0.0
    %1692 = vmatprep.subr.mxu0 0.0
    %1693 = vmatpush1.xpose.msra.mxu0 0.0
    %1694 = vmatprep.subr.mxu0 0.0
    %1695 = vmatpush1.xpose.msra.mxu0 0.0
    %1696 = vmatprep.subr.mxu0 0.0
    %1697 = vmatpush1.xpose.msra.mxu0 0.0
    %1698 = vmatprep.subr.mxu0 0.0
    %1699 = vmatpush1.xpose.msra.mxu0 0.0
    %1700 = vmatprep.subr.mxu0 0.0
    %1701 = vmatpush1.xpose.msra.mxu0 0.0
    %1702 = vmatprep.subr.mxu0 0.0
    %1703 = vmatpush1.xpose.msra.mxu0 0.0
    %1704 = vmatprep.subr.mxu0 0.0
    %1705 = vmatpush1.xpose.msra.mxu0 0.0
    %1706 = vmatprep.subr.mxu0 0.0
    %1707 = vmatpush1.xpose.msra.mxu0 0.0
    %1708 = vmatprep.subr.mxu0 0.0
    %1709 = vmatpush1.xpose.msra.mxu0 0.0
    %1710 = vmatprep.subr.mxu0 0.0
    %1711 = vmatpush1.xpose.msra.mxu0 0.0
    %1712 = vmatprep.subr.mxu0 0.0
    %1713 = vmatpush1.xpose.msra.mxu0 0.0
    %1714 = vmatprep.subr.mxu0 0.0
    %1715 = vmatpush1.xpose.msra.mxu0 0.0
    %1716 = vmatprep.subr.mxu0 0.0
    %1717 = vmatpush1.xpose.msra.mxu0 0.0
    %1718 = vmatprep.subr.mxu0 0.0
    %1719 = vmatpush1.xpose.msra.mxu0 0.0
    %1720 = vmatprep.subr.mxu0 0.0
    %1721 = vmatpush1.xpose.msra.mxu0 0.0
    %1722 = vmatprep.subr.mxu0 0.0
    %1723 = vmatpush1.xpose.msra.mxu0 0.0
    %1724 = vmatprep.subr.mxu0 0.0
    %1725 = vmatpush1.xpose.msra.mxu0 0.0
    %1726 = vmatprep.subr.mxu0 0.0
    %1727 = vmatpush1.xpose.msra.mxu0 0.0
    %1728 = vmatprep.subr.mxu0 0.0
    %1729 = vmatpush1.xpose.msra.mxu0 0.0
    %1730 = vmatprep.subr.mxu0 0.0
    %1731 = vmatpush1.xpose.msra.mxu0 0.0
    %1732 = vmatprep.subr.mxu0 0.0
    %1733 = vmatpush1.xpose.msra.mxu0 0.0
    %1734 = vmatprep.subr.mxu0 0.0
    %1735 = vmatpush1.xpose.msra.mxu0 0.0
    %1736 = vmatprep.subr.mxu0 0.0
    %1737 = vmatpush1.xpose.msra.mxu0 0.0
    %1738 = vmatprep.subr.mxu0 0.0
    %1739 = vmatpush1.xpose.msra.mxu0 0.0
    %1740 = vmatprep.mubr.f32.mxu0 0.0
    %1741 = vmatmul.mubr.f32.gmra.mrb[0].mxu0 %v1670
    %v1742 = vpop.f32.mrb[0].mxu0
    %v1743 = vadd.f32 0.0, %v1742
    %v1744 = vpop.f32.mrb[0].mxu0
    %1745 = vdwg.mxu0
    %v1746 = vlaneseq
    %v1747 = vshrl.u32 %v1746, 7
    %v1748 = vsub.s32 0, %v1747
    %v1749 = vrot.slane %v1743, %v1748
    %v1750 = vadd.f32 %v1661, %v1749
    %v1751 = vadd.f32 %v1664, %v1749
    %vm1752 = vcmp.ge.f32.partialorder %v1750, 0.0
    %vm1753 = vcmp.ge.f32.partialorder %v1751, 0.0
    %v1754 = vmul.f32 %v1750, 0.2
    %v1755 = vmul.f32 %v1751, 0.2
    %v1756 = vsel %vm1752, %v1750, %v1754
    %v1757 = vsel %vm1753, %v1751, %v1755
    %v1758 = vadd.f32 %v1756, %v92
    %v1759 = vadd.f32 %v1757, %v93
    %v1760 = vsel %vm287, %v1758, -inf
    %1761 = vmax.xlane.f32.xlu0 %v1760
    %v1762 = vpop.xlane.xlu0 %1761
    %v1763 = vsel %vm287, %v1759, -inf
    %1764 = vmax.xlane.f32.xlu0 %v1763
    %v1765 = vpop.xlane.xlu0 %1764
    %v1766 = vsub.f32 %v1758, %v1762
    %v1767 = vsub.f32 %v1759, %v1765
    %v1768 = vmul.f32 %v1766, 1.442695
    %v1769 = vpow.pop %v1768
    %v1770 = vmul.f32 %v1767, 1.442695
    %v1771 = vpow.pop %v1770
    %v1772 = vsel %vm287, %v1769, 0.0
    %1773 = vadd.xlane.f32.xlu0 %v1772
    %v1774 = vpop.xlane.xlu0 %1773
    %v1775 = vsel %vm287, %v1771, 0.0
    %1776 = vadd.xlane.f32.xlu0 %v1775
    %v1777 = vpop.xlane.xlu0 %1776
    %v1778 = vmax.f32 %v1774, 1e-30
    %v1779 = vmax.f32 %v1777, 1e-30
    %v1780 = vrcp.pop %v1778
    %v1781 = vmul.f32 %v1769, %v1780
    %v1782 = vrcp.pop %v1779
    %v1783 = vmul.f32 %v1771, %v1782
    %v1787 = vsel %vm287, %v1781, 0
    %v1790 = vsel %vm287, %v1783, 0
    %1792 = vmatprep.subr.mxu0 0.0
    %1793 = vmatpush1.msra.mxu0 %v1667
    %1794 = vmatprep.subr.mxu0 0.0
    %1795 = vmatpush1.msra.mxu0 %v1669
    %1796 = vmatprep.subr.mxu0 0.0
    %1797 = vmatpush1.msra.mxu0 0.0
    %1798 = vmatprep.subr.mxu0 0.0
    %1799 = vmatpush1.msra.mxu0 0.0
    %1800 = vmatprep.subr.mxu0 0.0
    %1801 = vmatpush1.msra.mxu0 0.0
    %1802 = vmatprep.subr.mxu0 0.0
    %1803 = vmatpush1.msra.mxu0 0.0
    %1804 = vmatprep.subr.mxu0 0.0
    %1805 = vmatpush1.msra.mxu0 0.0
    %1806 = vmatprep.subr.mxu0 0.0
    %1807 = vmatpush1.msra.mxu0 0.0
    %1808 = vmatprep.subr.mxu0 0.0
    %1809 = vmatpush1.msra.mxu0 0.0
    %1810 = vmatprep.subr.mxu0 0.0
    %1811 = vmatpush1.msra.mxu0 0.0
    %1812 = vmatprep.subr.mxu0 0.0
    %1813 = vmatpush1.msra.mxu0 0.0
    %1814 = vmatprep.subr.mxu0 0.0
    %1815 = vmatpush1.msra.mxu0 0.0
    %1816 = vmatprep.subr.mxu0 0.0
    %1817 = vmatpush1.msra.mxu0 0.0
    %1818 = vmatprep.subr.mxu0 0.0
    %1819 = vmatpush1.msra.mxu0 0.0
    %1820 = vmatprep.subr.mxu0 0.0
    %1821 = vmatpush1.msra.mxu0 0.0
    %1822 = vmatprep.subr.mxu0 0.0
    %1823 = vmatpush1.msra.mxu0 0.0
    %1824 = vmatprep.subr.mxu0 0.0
    %1825 = vmatpush1.msra.mxu0 0.0
    %1826 = vmatprep.subr.mxu0 0.0
    %1827 = vmatpush1.msra.mxu0 0.0
    %1828 = vmatprep.subr.mxu0 0.0
    %1829 = vmatpush1.msra.mxu0 0.0
    %1830 = vmatprep.subr.mxu0 0.0
    %1831 = vmatpush1.msra.mxu0 0.0
    %1832 = vmatprep.subr.mxu0 0.0
    %1833 = vmatpush1.msra.mxu0 0.0
    %1834 = vmatprep.subr.mxu0 0.0
    %1835 = vmatpush1.msra.mxu0 0.0
    %1836 = vmatprep.subr.mxu0 0.0
    %1837 = vmatpush1.msra.mxu0 0.0
    %1838 = vmatprep.subr.mxu0 0.0
    %1839 = vmatpush1.msra.mxu0 0.0
    %1840 = vmatprep.subr.mxu0 0.0
    %1841 = vmatpush1.msra.mxu0 0.0
    %1842 = vmatprep.subr.mxu0 0.0
    %1843 = vmatpush1.msra.mxu0 0.0
    %1844 = vmatprep.subr.mxu0 0.0
    %1845 = vmatpush1.msra.mxu0 0.0
    %1846 = vmatprep.subr.mxu0 0.0
    %1847 = vmatpush1.msra.mxu0 0.0
    %1848 = vmatprep.subr.mxu0 0.0
    %1849 = vmatpush1.msra.mxu0 0.0
    %1850 = vmatprep.subr.mxu0 0.0
    %1851 = vmatpush1.msra.mxu0 0.0
    %1852 = vmatprep.subr.mxu0 0.0
    %1853 = vmatpush1.msra.mxu0 0.0
    %1854 = vmatprep.subr.mxu0 0.0
    %1855 = vmatpush1.msra.mxu0 0.0
    %1856 = vmatprep.mubr.f32.mxu0 0.0
    %1857 = vmatmul.mubr.f32.gmra.mrb[0].mxu0 %v1787
    %v1858 = vpop.f32.mrb[0].mxu0
    %v1859 = vadd.f32 0.0, %v1858
    %v1860 = vpop.f32.mrb[0].mxu0
    %1861 = vmatprep.mubr.f32.mxu0 0.0
    %1862 = vmatmul.mubr.f32.gmra.mrb[0].mxu0 %v1790
    %v1863 = vpop.f32.mrb[0].mxu0
    %v1864 = vadd.f32 0.0, %v1863
    %v1865 = vpop.f32.mrb[0].mxu0
    %1866 = vdwg.mxu0
    %v1867 = vlaneseq
    %v1868 = vshrl.u32 %v1867, 7
    %v1869 = vsub.s32 3, %v1868
    %v1870 = vrot.slane %v1121, %v1869
    %1872 = vrot.lane.b32.xlu0 %v1870, 24
    %v1873 = vpop.permute.xlu0 %1872
    %v1875 = vmul.f32 %v1197, %v1873
    %v1876 = vmul.f32 %v1202, %v1873
    %1879 = vrot.lane.b32.xlu0 %v1875, 104
    %v1880 = vpop.permute.xlu0 %1879
    %1881 = vrot.lane.b32.xlu0 %v1876, 104
    %v1882 = vpop.permute.xlu0 %1881
    %v1885 = vsel %vm100, %v1880, 0.0
    %1886 = vadd.xlane.f32.xlu0 %v1885
    %v1887 = vpop.xlane.xlu0 %1886
    %v1888 = vsel %vm100, %v1882, 0.0
    %1889 = vadd.xlane.f32.xlu0 %v1888
    %v1890 = vpop.xlane.xlu0 %1889
    %v1891 = vrot.slane %v1120, 3
    %1892 = vrot.lane.b32.xlu0 %v1197, 104
    %v1893 = vpop.permute.xlu0 %1892
    %1894 = vrot.lane.b32.xlu0 %v1202, 104
    %v1895 = vpop.permute.xlu0 %1894
    %v1896 = vsel %vm100, %v1891, 0
    %v1898 = vsel %vm100, %v1893, 0
    %v1900 = vsel %vm100, %v1895, 0
    %1902 = vmatprep.subr.mxu0 0.0
    %1903 = vmatpush1.xpose.msra.mxu0 %v1898
    %1904 = vmatprep.subr.mxu0 0.0
    %1905 = vmatpush1.xpose.msra.mxu0 %v1900
    %1906 = vmatprep.subr.mxu0 0.0
    %1907 = vmatpush1.xpose.msra.mxu0 0.0
    %1908 = vmatprep.subr.mxu0 0.0
    %1909 = vmatpush1.xpose.msra.mxu0 0.0
    %1910 = vmatprep.subr.mxu0 0.0
    %1911 = vmatpush1.xpose.msra.mxu0 0.0
    %1912 = vmatprep.subr.mxu0 0.0
    %1913 = vmatpush1.xpose.msra.mxu0 0.0
    %1914 = vmatprep.subr.mxu0 0.0
    %1915 = vmatpush1.xpose.msra.mxu0 0.0
    %1916 = vmatprep.subr.mxu0 0.0
    %1917 = vmatpush1.xpose.msra.mxu0 0.0
    %1918 = vmatprep.subr.mxu0 0.0
    %1919 = vmatpush1.xpose.msra.mxu0 0.0
    %1920 = vmatprep.subr.mxu0 0.0
    %1921 = vmatpush1.xpose.msra.mxu0 0.0
    %1922 = vmatprep.subr.mxu0 0.0
    %1923 = vmatpush1.xpose.msra.mxu0 0.0
    %1924 = vmatprep.subr.mxu0 0.0
    %1925 = vmatpush1.xpose.msra.mxu0 0.0
    %1926 = vmatprep.subr.mxu0 0.0
    %1927 = vmatpush1.xpose.msra.mxu0 0.0
    %1928 = vmatprep.subr.mxu0 0.0
    %1929 = vmatpush1.xpose.msra.mxu0 0.0
    %1930 = vmatprep.subr.mxu0 0.0
    %1931 = vmatpush1.xpose.msra.mxu0 0.0
    %1932 = vmatprep.subr.mxu0 0.0
    %1933 = vmatpush1.xpose.msra.mxu0 0.0
    %1934 = vmatprep.subr.mxu0 0.0
    %1935 = vmatpush1.xpose.msra.mxu0 0.0
    %1936 = vmatprep.subr.mxu0 0.0
    %1937 = vmatpush1.xpose.msra.mxu0 0.0
    %1938 = vmatprep.subr.mxu0 0.0
    %1939 = vmatpush1.xpose.msra.mxu0 0.0
    %1940 = vmatprep.subr.mxu0 0.0
    %1941 = vmatpush1.xpose.msra.mxu0 0.0
    %1942 = vmatprep.subr.mxu0 0.0
    %1943 = vmatpush1.xpose.msra.mxu0 0.0
    %1944 = vmatprep.subr.mxu0 0.0
    %1945 = vmatpush1.xpose.msra.mxu0 0.0
    %1946 = vmatprep.subr.mxu0 0.0
    %1947 = vmatpush1.xpose.msra.mxu0 0.0
    %1948 = vmatprep.subr.mxu0 0.0
    %1949 = vmatpush1.xpose.msra.mxu0 0.0
    %1950 = vmatprep.subr.mxu0 0.0
    %1951 = vmatpush1.xpose.msra.mxu0 0.0
    %1952 = vmatprep.subr.mxu0 0.0
    %1953 = vmatpush1.xpose.msra.mxu0 0.0
    %1954 = vmatprep.subr.mxu0 0.0
    %1955 = vmatpush1.xpose.msra.mxu0 0.0
    %1956 = vmatprep.subr.mxu0 0.0
    %1957 = vmatpush1.xpose.msra.mxu0 0.0
    %1958 = vmatprep.subr.mxu0 0.0
    %1959 = vmatpush1.xpose.msra.mxu0 0.0
    %1960 = vmatprep.subr.mxu0 0.0
    %1961 = vmatpush1.xpose.msra.mxu0 0.0
    %1962 = vmatprep.subr.mxu0 0.0
    %1963 = vmatpush1.xpose.msra.mxu0 0.0
    %1964 = vmatprep.subr.mxu0 0.0
    %1965 = vmatpush1.xpose.msra.mxu0 0.0
    %1966 = vmatprep.mubr.f32.mxu0 0.0
    %1967 = vmatmul.mubr.f32.gmra.mrb[0].mxu0 %v1896
    %v1968 = vpop.f32.mrb[0].mxu0
    %v1969 = vadd.f32 0.0, %v1968
    %v1970 = vpop.f32.mrb[0].mxu0
    %1971 = vdwg.mxu0
    %v1972 = vlaneseq
    %v1973 = vshrl.u32 %v1972, 7
    %v1974 = vsub.s32 0, %v1973
    %v1975 = vrot.slane %v1969, %v1974
    %v1976 = vadd.f32 %v1887, %v1975
    %v1977 = vadd.f32 %v1890, %v1975
    %vm1978 = vcmp.ge.f32.partialorder %v1976, 0.0
    %vm1979 = vcmp.ge.f32.partialorder %v1977, 0.0
    %v1980 = vmul.f32 %v1976, 0.2
    %v1981 = vmul.f32 %v1977, 0.2
    %v1982 = vsel %vm1978, %v1976, %v1980
    %v1983 = vsel %vm1979, %v1977, %v1981
    %v1984 = vadd.f32 %v1982, %v92
    %v1985 = vadd.f32 %v1983, %v93
    %v1986 = vsel %vm287, %v1984, -inf
    %1987 = vmax.xlane.f32.xlu0 %v1986
    %v1988 = vpop.xlane.xlu0 %1987
    %v1989 = vsel %vm287, %v1985, -inf
    %1990 = vmax.xlane.f32.xlu0 %v1989
    %v1991 = vpop.xlane.xlu0 %1990
    %v1992 = vsub.f32 %v1984, %v1988
    %v1993 = vsub.f32 %v1985, %v1991
    %v1994 = vmul.f32 %v1992, 1.442695
    %v1995 = vpow.pop %v1994
    %v1996 = vmul.f32 %v1993, 1.442695
    %v1997 = vpow.pop %v1996
    %v1998 = vsel %vm287, %v1995, 0.0
    %1999 = vadd.xlane.f32.xlu0 %v1998
    %v2000 = vpop.xlane.xlu0 %1999
    %v2001 = vsel %vm287, %v1997, 0.0
    %2002 = vadd.xlane.f32.xlu0 %v2001
    %v2003 = vpop.xlane.xlu0 %2002
    %v2004 = vmax.f32 %v2000, 1e-30
    %v2005 = vmax.f32 %v2003, 1e-30
    %v2006 = vrcp.pop %v2004
    %v2007 = vmul.f32 %v1995, %v2006
    %v2008 = vrcp.pop %v2005
    %v2009 = vmul.f32 %v1997, %v2008
    %v2013 = vsel %vm287, %v2007, 0
    %v2016 = vsel %vm287, %v2009, 0
    %2018 = vmatprep.subr.mxu0 0.0
    %2019 = vmatpush1.msra.mxu0 %v1893
    %2020 = vmatprep.subr.mxu0 0.0
    %2021 = vmatpush1.msra.mxu0 %v1895
    %2022 = vmatprep.subr.mxu0 0.0
    %2023 = vmatpush1.msra.mxu0 0.0
    %2024 = vmatprep.subr.mxu0 0.0
    %2025 = vmatpush1.msra.mxu0 0.0
    %2026 = vmatprep.subr.mxu0 0.0
    %2027 = vmatpush1.msra.mxu0 0.0
    %2028 = vmatprep.subr.mxu0 0.0
    %2029 = vmatpush1.msra.mxu0 0.0
    %2030 = vmatprep.subr.mxu0 0.0
    %2031 = vmatpush1.msra.mxu0 0.0
    %2032 = vmatprep.subr.mxu0 0.0
    %2033 = vmatpush1.msra.mxu0 0.0
    %2034 = vmatprep.subr.mxu0 0.0
    %2035 = vmatpush1.msra.mxu0 0.0
    %2036 = vmatprep.subr.mxu0 0.0
    %2037 = vmatpush1.msra.mxu0 0.0
    %2038 = vmatprep.subr.mxu0 0.0
    %2039 = vmatpush1.msra.mxu0 0.0
    %2040 = vmatprep.subr.mxu0 0.0
    %2041 = vmatpush1.msra.mxu0 0.0
    %2042 = vmatprep.subr.mxu0 0.0
    %2043 = vmatpush1.msra.mxu0 0.0
    %2044 = vmatprep.subr.mxu0 0.0
    %2045 = vmatpush1.msra.mxu0 0.0
    %2046 = vmatprep.subr.mxu0 0.0
    %2047 = vmatpush1.msra.mxu0 0.0
    %2048 = vmatprep.subr.mxu0 0.0
    %2049 = vmatpush1.msra.mxu0 0.0
    %2050 = vmatprep.subr.mxu0 0.0
    %2051 = vmatpush1.msra.mxu0 0.0
    %2052 = vmatprep.subr.mxu0 0.0
    %2053 = vmatpush1.msra.mxu0 0.0
    %2054 = vmatprep.subr.mxu0 0.0
    %2055 = vmatpush1.msra.mxu0 0.0
    %2056 = vmatprep.subr.mxu0 0.0
    %2057 = vmatpush1.msra.mxu0 0.0
    %2058 = vmatprep.subr.mxu0 0.0
    %2059 = vmatpush1.msra.mxu0 0.0
    %2060 = vmatprep.subr.mxu0 0.0
    %2061 = vmatpush1.msra.mxu0 0.0
    %2062 = vmatprep.subr.mxu0 0.0
    %2063 = vmatpush1.msra.mxu0 0.0
    %2064 = vmatprep.subr.mxu0 0.0
    %2065 = vmatpush1.msra.mxu0 0.0
    %2066 = vmatprep.subr.mxu0 0.0
    %2067 = vmatpush1.msra.mxu0 0.0
    %2068 = vmatprep.subr.mxu0 0.0
    %2069 = vmatpush1.msra.mxu0 0.0
    %2070 = vmatprep.subr.mxu0 0.0
    %2071 = vmatpush1.msra.mxu0 0.0
    %2072 = vmatprep.subr.mxu0 0.0
    %2073 = vmatpush1.msra.mxu0 0.0
    %2074 = vmatprep.subr.mxu0 0.0
    %2075 = vmatpush1.msra.mxu0 0.0
    %2076 = vmatprep.subr.mxu0 0.0
    %2077 = vmatpush1.msra.mxu0 0.0
    %2078 = vmatprep.subr.mxu0 0.0
    %2079 = vmatpush1.msra.mxu0 0.0
    %2080 = vmatprep.subr.mxu0 0.0
    %2081 = vmatpush1.msra.mxu0 0.0
    %2082 = vmatprep.mubr.f32.mxu0 0.0
    %2083 = vmatmul.mubr.f32.gmra.mrb[0].mxu0 %v2013
    %v2084 = vpop.f32.mrb[0].mxu0
    %v2085 = vadd.f32 0.0, %v2084
    %v2086 = vpop.f32.mrb[0].mxu0
    %2087 = vmatprep.mubr.f32.mxu0 0.0
    %2088 = vmatmul.mubr.f32.gmra.mrb[0].mxu0 %v2016
    %v2089 = vpop.f32.mrb[0].mxu0
    %v2090 = vadd.f32 0.0, %v2089
    %v2091 = vpop.f32.mrb[0].mxu0
    %2092 = vdwg.mxu0
    %2095 = vrot.lane.b32.xlu0 %v1633, 8
    %v2096 = vpop.permute.xlu0 %2095
    %2097 = vrot.lane.b32.xlu0 %v1638, 8
    %v2098 = vpop.permute.xlu0 %2097
    %2103 = vrot.lane.b32.xlu0 %v1859, 16
    %v2104 = vpop.permute.xlu0 %2103
    %2105 = vrot.lane.b32.xlu0 %v1864, 16
    %v2106 = vpop.permute.xlu0 %2105
    %2111 = vrot.lane.b32.xlu0 %v2085, 24
    %v2112 = vpop.permute.xlu0 %2111
    %2113 = vrot.lane.b32.xlu0 %v2090, 24
    %v2114 = vpop.permute.xlu0 %2113
    %v2117 = vsel %vm100, %v1407, %v2096
    %v2118 = vsel %vm100, %v1412, %v2098
    %v2119 = vsel %vm287, %v2117, %v2104
    %v2120 = vsel %vm287, %v2118, %v2106
    %v2121 = vsel %vm1099, %v2119, %v2112
    %v2122 = vsel %vm1099, %v2120, %v2114
    %v2124 = vlaneseq
    %v2125 = vshrl.u32 %v2124, 7
    %v2126 = vsub.s32 0, %v2125
    %v2127 = vrot.slane %v1122, %v2126
    %v2129 = vadd.f32 %v2121, %v2127
    %v2130 = vadd.f32 %v2122, %v2127
    %vm2131 = vcmp.ge.f32.partialorder %v2129, 0.0
    %vm2132 = vcmp.ge.f32.partialorder %v2130, 0.0
    %v2133 = vmul.f32 %v2129, 0.2
    %v2134 = vmul.f32 %v2130, 0.2
    %v2135 = vsel %vm2131, %v2129, %v2133
    %v2136 = vsel %vm2132, %v2130, %v2134
    %v2137 = vld [vmem:[%s10] sm:$0x3]
    %v2139 = vsel %vm287, %v2137, 0
    %2141 = vmatprep.subr.mxu0 0.0
    %2142 = vmatpush1.msra.mxu0 %v2135
    %2143 = vmatprep.subr.mxu0 0.0
    %2144 = vmatpush1.msra.mxu0 %v2136
    %2145 = vmatprep.subr.mxu0 0.0
    %2146 = vmatpush1.msra.mxu0 0.0
    %2147 = vmatprep.subr.mxu0 0.0
    %2148 = vmatpush1.msra.mxu0 0.0
    %2149 = vmatprep.subr.mxu0 0.0
    %2150 = vmatpush1.msra.mxu0 0.0
    %2151 = vmatprep.subr.mxu0 0.0
    %2152 = vmatpush1.msra.mxu0 0.0
    %2153 = vmatprep.subr.mxu0 0.0
    %2154 = vmatpush1.msra.mxu0 0.0
    %2155 = vmatprep.subr.mxu0 0.0
    %2156 = vmatpush1.msra.mxu0 0.0
    %2157 = vmatprep.subr.mxu0 0.0
    %2158 = vmatpush1.msra.mxu0 0.0
    %2159 = vmatprep.subr.mxu0 0.0
    %2160 = vmatpush1.msra.mxu0 0.0
    %2161 = vmatprep.subr.mxu0 0.0
    %2162 = vmatpush1.msra.mxu0 0.0
    %2163 = vmatprep.subr.mxu0 0.0
    %2164 = vmatpush1.msra.mxu0 0.0
    %2165 = vmatprep.subr.mxu0 0.0
    %2166 = vmatpush1.msra.mxu0 0.0
    %2167 = vmatprep.subr.mxu0 0.0
    %2168 = vmatpush1.msra.mxu0 0.0
    %2169 = vmatprep.subr.mxu0 0.0
    %2170 = vmatpush1.msra.mxu0 0.0
    %2171 = vmatprep.subr.mxu0 0.0
    %2172 = vmatpush1.msra.mxu0 0.0
    %2173 = vmatprep.subr.mxu0 0.0
    %2174 = vmatpush1.msra.mxu0 0.0
    %2175 = vmatprep.subr.mxu0 0.0
    %2176 = vmatpush1.msra.mxu0 0.0
    %2177 = vmatprep.subr.mxu0 0.0
    %2178 = vmatpush1.msra.mxu0 0.0
    %2179 = vmatprep.subr.mxu0 0.0
    %2180 = vmatpush1.msra.mxu0 0.0
    %2181 = vmatprep.subr.mxu0 0.0
    %2182 = vmatpush1.msra.mxu0 0.0
    %2183 = vmatprep.subr.mxu0 0.0
    %2184 = vmatpush1.msra.mxu0 0.0
    %2185 = vmatprep.subr.mxu0 0.0
    %2186 = vmatpush1.msra.mxu0 0.0
    %2187 = vmatprep.subr.mxu0 0.0
    %2188 = vmatpush1.msra.mxu0 0.0
    %2189 = vmatprep.subr.mxu0 0.0
    %2190 = vmatpush1.msra.mxu0 0.0
    %2191 = vmatprep.subr.mxu0 0.0
    %2192 = vmatpush1.msra.mxu0 0.0
    %2193 = vmatprep.subr.mxu0 0.0
    %2194 = vmatpush1.msra.mxu0 0.0
    %2195 = vmatprep.subr.mxu0 0.0
    %2196 = vmatpush1.msra.mxu0 0.0
    %2197 = vmatprep.subr.mxu0 0.0
    %2198 = vmatpush1.msra.mxu0 0.0
    %2199 = vmatprep.subr.mxu0 0.0
    %2200 = vmatpush1.msra.mxu0 0.0
    %2201 = vmatprep.subr.mxu0 0.0
    %2202 = vmatpush1.msra.mxu0 0.0
    %2203 = vmatprep.subr.mxu0 0.0
    %2204 = vmatpush1.msra.mxu0 0.0
    %2205 = vmatprep.mubr.f32.mxu0 0.0
    %2206 = vmatmul.mubr.f32.gmra.mrb[0].mxu0 %v2139
    %v2207 = vpop.f32.mrb[0].mxu0
    %v2208 = vadd.f32 0.0, %v2207
    %v2209 = vpop.f32.mrb[0].mxu0
    %2210 = vdwg.mxu0
    %v2211 = vld [vmem:[%s11] sm:$0xff]
    %v2212 = vld [vmem:[%s11 + $0x8] sm:$0xff]
    %v2213 = vld [vmem:[%s11 + $0x10] sm:$0xff]
    %v2214 = vld [vmem:[%s11 + $0x18] sm:$0xff]
    %v2215 = vld [vmem:[%s12] sm:$0x1]
    %v2217 = vlaneseq
    %v2218 = vshrl.u32 %v2217, 7
    %v2219 = vsub.s32 0, %v2218
    %v2220 = vrot.slane %v2215, %v2219
    %v2223 = vsel %vm1123, %v2208, 0
    %2225 = vmatprep.subr.mxu0 0.0
    %2226 = vmatpush1.msra.mxu0 %v2211
    %2227 = vmatprep.subr.mxu0 0.0
    %2228 = vmatpush1.msra.mxu0 %v2212
    %2229 = vmatprep.subr.mxu0 0.0
    %2230 = vmatpush1.msra.mxu0 %v2213
    %2231 = vmatprep.subr.mxu0 0.0
    %2232 = vmatpush1.msra.mxu0 %v2214
    %2233 = vmatprep.subr.mxu0 0.0
    %2234 = vmatpush1.msra.mxu0 0.0
    %2235 = vmatprep.subr.mxu0 0.0
    %2236 = vmatpush1.msra.mxu0 0.0
    %2237 = vmatprep.subr.mxu0 0.0
    %2238 = vmatpush1.msra.mxu0 0.0
    %2239 = vmatprep.subr.mxu0 0.0
    %2240 = vmatpush1.msra.mxu0 0.0
    %2241 = vmatprep.subr.mxu0 0.0
    %2242 = vmatpush1.msra.mxu0 0.0
    %2243 = vmatprep.subr.mxu0 0.0
    %2244 = vmatpush1.msra.mxu0 0.0
    %2245 = vmatprep.subr.mxu0 0.0
    %2246 = vmatpush1.msra.mxu0 0.0
    %2247 = vmatprep.subr.mxu0 0.0
    %2248 = vmatpush1.msra.mxu0 0.0
    %2249 = vmatprep.subr.mxu0 0.0
    %2250 = vmatpush1.msra.mxu0 0.0
    %2251 = vmatprep.subr.mxu0 0.0
    %2252 = vmatpush1.msra.mxu0 0.0
    %2253 = vmatprep.subr.mxu0 0.0
    %2254 = vmatpush1.msra.mxu0 0.0
    %2255 = vmatprep.subr.mxu0 0.0
    %2256 = vmatpush1.msra.mxu0 0.0
    %2257 = vmatprep.subr.mxu0 0.0
    %2258 = vmatpush1.msra.mxu0 0.0
    %2259 = vmatprep.subr.mxu0 0.0
    %2260 = vmatpush1.msra.mxu0 0.0
    %2261 = vmatprep.subr.mxu0 0.0
    %2262 = vmatpush1.msra.mxu0 0.0
    %2263 = vmatprep.subr.mxu0 0.0
    %2264 = vmatpush1.msra.mxu0 0.0
    %2265 = vmatprep.subr.mxu0 0.0
    %2266 = vmatpush1.msra.mxu0 0.0
    %2267 = vmatprep.subr.mxu0 0.0
    %2268 = vmatpush1.msra.mxu0 0.0
    %2269 = vmatprep.subr.mxu0 0.0
    %2270 = vmatpush1.msra.mxu0 0.0
    %2271 = vmatprep.subr.mxu0 0.0
    %2272 = vmatpush1.msra.mxu0 0.0
    %2273 = vmatprep.subr.mxu0 0.0
    %2274 = vmatpush1.msra.mxu0 0.0
    %2275 = vmatprep.subr.mxu0 0.0
    %2276 = vmatpush1.msra.mxu0 0.0
    %2277 = vmatprep.subr.mxu0 0.0
    %2278 = vmatpush1.msra.mxu0 0.0
    %2279 = vmatprep.subr.mxu0 0.0
    %2280 = vmatpush1.msra.mxu0 0.0
    %2281 = vmatprep.subr.mxu0 0.0
    %2282 = vmatpush1.msra.mxu0 0.0
    %2283 = vmatprep.subr.mxu0 0.0
    %2284 = vmatpush1.msra.mxu0 0.0
    %2285 = vmatprep.subr.mxu0 0.0
    %2286 = vmatpush1.msra.mxu0 0.0
    %2287 = vmatprep.subr.mxu0 0.0
    %2288 = vmatpush1.msra.mxu0 0.0
    %2289 = vmatprep.mubr.f32.mxu0 0.0
    %2290 = vmatmul.mubr.f32.gmra.mrb[0].mxu0 %v2223
    %v2291 = vpop.f32.mrb[0].mxu0
    %v2292 = vadd.f32 %v2220, %v2291
    %v2293 = vpop.f32.mrb[0].mxu0
    %2294 = vdwg.mxu0
    %v2295 = vld [vmem:[%s16] sm:$0x1]
    %v2296 = vadd.f32 %v2295, 1e-05
    %v2297 = vrsqrt.pop %v2296
    %v2298 = vld [vmem:[#allocation7] sm:$0x1]
    %v2300 = vlaneseq
    %v2301 = vshrl.u32 %v2300, 7
    %v2302 = vsub.s32 0, %v2301
    %v2303 = vrot.slane %v2298, %v2302
    %v2305 = vsub.f32 %v2292, %v2303
    %v2307 = vlaneseq
    %v2308 = vshrl.u32 %v2307, 7
    %v2309 = vsub.s32 0, %v2308
    %v2310 = vrot.slane %v2297, %v2309
    %v2312 = vmul.f32 %v2305, %v2310
    %v2313 = vld [vmem:[#allocation2] sm:$0x1]
    %v2315 = vlaneseq
    %v2316 = vshrl.u32 %v2315, 7
    %v2317 = vsub.s32 0, %v2316
    %v2318 = vrot.slane %v2313, %v2317
    %v2320 = vmul.f32 %v2312, %v2318
    %v2321 = vld [vmem:[#allocation5] sm:$0x1]
    %v2323 = vlaneseq
    %v2324 = vshrl.u32 %v2323, 7
    %v2325 = vsub.s32 0, %v2324
    %v2326 = vrot.slane %v2321, %v2325
    %v2328 = vadd.f32 %v2320, %v2326
    %vm2329 = vcmask 123904
    %2330 = vst.msk [vmem:[#allocation8] sm:$0x3] %vm2329, %v2328
    // Predicated region
    $region82: #{gat_forward.1} parent=1 // pred_check
      _
    $region83: #{gat_forward.1} parent=1 // pred_check_branch
      %2332 = sbr.rel (0) target = $region85
    $region84: #{gat_forward.1} parent=1 // pred_region
      %s2334 = ssub.s32 32, 32
      %2335 = vsyncadd [#allocation4], %s2334
      %s2337 = sshll.u32 [#allocation8], 4
      %s2338 = int_to_ptr.vmem [resolvable:$true] %s2337
      %2340 = dma.vmem_to_hbm [thread:$0]  %s2338, 32, %s17, [#allocation4]
    $region85: #{gat_forward.1} parent=1 // pred_fallthru
      _
    // Predicated region
    $region86: #{gat_forward.1} parent=1 // pred_check
      _
    $region87: #{gat_forward.1} parent=1 // pred_check_branch
      %2342 = sbr.rel (0) target = $region89
    $region88: #{gat_forward.1} parent=1 // pred_region
      %2343 = dma.done [#allocation4], 32
    $region89: #{gat_forward.1} parent=1 // pred_fallthru
      _
    %2344 = vsyncpa [#allocation3], 1
    %2345 = vsyncpa [#allocation6], 1
    %2346 = vsyncpa [#allocation4], 1

</llo_original>
